<compile_context>
chip_gen: v7x
topology: tpu7x:2x2x1
jax: 0.10.0
libtpu: 0.0.40
codegen_flags: <defaults>
</compile_context>

<pallas_src>
import jax
import jax.numpy as jnp
from jax.experimental import pallas as pl
from jax.experimental.pallas import tpu as pltpu

IMG = 200     # output canvas is (200, 200)
PATCH = 31    # x-15 : x+16  ->  31-wide patch
HALF = 15
PAD = 32      # per-emitter slab rows in the stacked contraction (31 -> 32)


def _make_kernel(ne_total: int, e_blk: int, compute_dtype):
    """Kernel factory: ne_total / e_blk / dtype are static (closed over)."""

    def kernel(xyz_ref, patch_ref, out_ref):
        b = pl.program_id(0)   # batch
        g = pl.program_id(1)   # emitter group

        # Output block is revisited across the emitter-group axis -> zero once.
        @pl.when(g == 0)
        def _():
            out_ref[...] = jnp.zeros_like(out_ref)

        # ---- Loop-invariant iota differences (compile-time constants). ----
        kc = jax.lax.broadcasted_iota(jnp.int32, (PATCH, IMG), 0)
        cc = jax.lax.broadcasted_iota(jnp.int32, (PATCH, IMG), 1)
        diff_col = cc - kc                               # (PATCH, IMG)
        rr = jax.lax.broadcasted_iota(jnp.int32, (IMG, PAD), 0)
        kr = jax.lax.broadcasted_iota(jnp.int32, (IMG, PAD), 1)
        diff_row = rr - kr                               # (IMG, PAD)

        zero_rows = jnp.zeros((PAD - PATCH, PATCH), compute_dtype)

        # Flat xyz layout: element [b, j, c] lives at b*2*ne_total + 2*j + c.
        base = b * (2 * ne_total) + 2 * g * e_blk

        a_slabs = []     # per-emitter (PAD, IMG) column-placed patches
        s_rows = []      # per-emitter (IMG, PAD) row-placement matrices
        for e in range(e_blk):                           # static unrolled loop
            x = xyz_ref[base + 2 * e]
            y = xyz_ref[base + 2 * e + 1]
            row0 = x - HALF                              # top row in canvas
            col0 = y - HALF                              # left col in canvas

            # Column placement: s_col[k, c] = (c == k + col0).
            s_col = (diff_col == col0).astype(compute_dtype)        # (31, 200)

            # Pad the patch to 32 rows so the stacked K is a multiple of 32.
            patch = patch_ref[e].astype(compute_dtype)               # (31, 31)
            patch_p = jnp.concatenate([patch, zero_rows], axis=0)    # (32, 31)

            # Column-placed slab: (32, 200); padded row stays exactly zero.
            a_e = jnp.dot(patch_p, s_col,
                          preferred_element_type=jnp.float32)
            a_slabs.append(a_e.astype(compute_dtype))

            # Row placement slab: s_row[r, k] = (r == k + row0); the k = 31
            # column is irrelevant since it multiplies the zero slab row.
            s_rows.append((diff_row == row0).astype(compute_dtype))  # (200, 32)

        a_stack = jnp.concatenate(a_slabs, axis=0)       # (e_blk*32, 200)
        s_row_stack = jnp.concatenate(s_rows, axis=1)    # (200, e_blk*32)

        # One stacked MXU pass: sum over all emitters in the group, fused
        # directly into the resident f32 accumulator (lane-dense 200-wide).
        out_ref[...] += jnp.dot(s_row_stack, a_stack,
                                preferred_element_type=jnp.float32)

    return kernel


def imgs4dto3d(images4D: jax.Array, xyz: jax.Array, e_blk: int = 8) -> jax.Array:
    """Pallas implementation of imgs4dto3d.forward.

    images4D : (Nbatch, Nemitters, 31, 31)
    xyz      : (Nbatch, Nemitters, >=2) emitter centers (x, y[, z])
    returns  : (Nbatch, 1, 200, 200) float32
    """
    Nb, Ne, H, W = images4D.shape
    assert H == PATCH and W == PATCH, "patch size implied by x-15:x+16 is 31"

    # Emitter-block size: 8 -> K=256 (v6e/v7x native), 4 -> K=128 (v5e native).
    e_blk = max(1, min(e_blk, Ne))
    n_groups = pl.cdiv(Ne, e_blk)
    ne_pad = n_groups * e_blk

    # bf16 operands only when the input is natively bf16 (lossless 0/1
    # selection either way; keeps f32 numerics otherwise).
    compute_dtype = jnp.bfloat16 if images4D.dtype == jnp.bfloat16 else jnp.float32

    # int(xyz) truncates toward zero; astype(int32) matches.  Flattened to 1-D
    # int32 for a padding-free SMEM layout.
    xyz_i = xyz[..., :2].astype(jnp.int32)
    if ne_pad != Ne:
        # Pad with zero patches (contribute nothing) + a safe in-range center.
        images4D = jnp.pad(images4D, ((0, 0), (0, ne_pad - Ne), (0, 0), (0, 0)))
        xyz_i = jnp.pad(xyz_i, ((0, 0), (0, ne_pad - Ne), (0, 0)),
                        constant_values=HALF)
    xyz_flat = xyz_i.reshape(-1)                         # (Nb * ne_pad * 2,)

    kernel = _make_kernel(ne_pad, e_blk, compute_dtype)

    grid_spec = pltpu.PrefetchScalarGridSpec(
        num_scalar_prefetch=1,
        grid=(Nb, n_groups),
        in_specs=[
            # Squeeze the batch dim; block e_blk emitters per step so each DMA
            # pulls a contiguous (e_blk, 31, 31) slab.  (31, 31) == full
            # trailing dims, which satisfies the (8, 128) rule.
            pl.BlockSpec((None, e_blk, PATCH, PATCH),
                         lambda b, g, xyz: (b, g, 0, 0)),
        ],
        # Same output block across the emitter-group axis -> VMEM-resident f32
        # accumulator; full (200, 200) lane-dense tile per store.
        out_specs=pl.BlockSpec((None, None, IMG, IMG),
                               lambda b, g, xyz: (b, 0, 0, 0)),
    )

    # TODO(synk): on v7x, if Nb is odd/1, split the emitter axis into two
    # core-parallel halves with per-core partial canvases to keep both TCs busy.
    return pl.pallas_call(
        kernel,
        out_shape=jax.ShapeDtypeStruct((Nb, 1, IMG, IMG), jnp.float32),
        grid_spec=grid_spec,
        compiler_params=pltpu.CompilerParams(
            dimension_semantics=("parallel", "arbitrary")),
    )(xyz_flat, images4D)


def _reference(images4D, xyz):
    """Pure-JAX replica of the PyTorch forward (host loop, concrete xyz)."""
    Nb, Ne, _, _ = images4D.shape
    xyz_i = jnp.asarray(xyz[..., :2]).astype(jnp.int32)
    img = jnp.zeros((Nb, 1, IMG, IMG), jnp.float32)
    for i in range(Nb):
        for j in range(Ne):
            x = int(xyz_i[i, j, 0])
            y = int(xyz_i[i, j, 1])
            img = img.at[i, 0, x - HALF:x + HALF + 1,
                         y - HALF:y + HALF + 1].add(
                             images4D[i, j].astype(jnp.float32))
    return img


if __name__ == "__main__":
    key = jax.random.PRNGKey(0)
    k1, k2 = jax.random.split(key)

    Nb, Ne = 2, 4
    images4D = jax.random.uniform(k1, (Nb, Ne, PATCH, PATCH),
                                  dtype=jnp.float32)
    # Emitter centers in [15, 184] so each 31x31 patch fits, as the PyTorch
    # slicing assumes.
    xyz = jax.random.uniform(k2, (Nb, Ne, 3), dtype=jnp.float32,
                             minval=15.0, maxval=184.0)

    out = imgs4dto3d(images4D, xyz)          # e_blk -> min(8, 4) = 4, K = 128
    out = jax.block_until_ready(out)

    ref = _reference(images4D, xyz)
    assert out.shape == (Nb, 1, IMG, IMG)
    assert out.dtype == jnp.float32
    assert jnp.allclose(out, ref, rtol=1e-5, atol=1e-5), "mismatch vs reference"

    print("KERNEL_OK")
</pallas_src>

<mosaic_0001>
module attributes {stable_mosaic.version = 11 : i64} {
  func.func @kernel(%arg0: i32, %arg1: i32, %arg2: memref<16xi32, #tpu.memory_space<smem>>, %arg3: memref<1x4x31x31xf32, #tpu.memory_space<vmem>>, %arg4: memref<1x1x200x200xf32, #tpu.memory_space<vmem>>) attributes {dimension_semantics = [#tpu.dimension_semantics<parallel>, #tpu.dimension_semantics<arbitrary>], iteration_bounds = array<i64: 2, 1>, scalar_prefetch = 1 : i64, scratch_operands = 0 : i64, tpu.core_type = #tpu.core_type<tc>, window_params = [{transform_indices = @transform_0, window_bounds = array<i64: 1, 4, 31, 31>}, {transform_indices = @transform_1, window_bounds = array<i64: 1, 1, 200, 200>}]} {
    %c0_i32 = arith.constant 0 : i32
    %0 = arith.cmpi eq, %arg1, %c0_i32 : i32
    %1 = arith.extui %0 : i1 to i32
    %c0_i32_0 = arith.constant 0 : i32
    %2 = arith.cmpi ne, %1, %c0_i32_0 : i32
    scf.if %2 {
      %cst_43 = arith.constant 0.000000e+00 : f32
      %107 = vector.broadcast %cst_43 : f32 to vector<200x200xf32>
      %c0_44 = arith.constant 0 : index
      %c0_45 = arith.constant 0 : index
      %c0_46 = arith.constant 0 : index
      %c0_47 = arith.constant 0 : index
      %108 = vector.load %arg4[%c0_44, %c0_45, %c0_46, %c0_47] : memref<1x1x200x200xf32, #tpu.memory_space<vmem>>, vector<1x1x200x200xf32>
      %109 = vector.shape_cast %108 : vector<1x1x200x200xf32> to vector<200x200xf32>
      %110 = vector.shape_cast %107 : vector<200x200xf32> to vector<1x1x200x200xf32>
      tpu.vector_store %arg4[%c0_44, %c0_45, %c0_46, %c0_47], %110 {strides = array<i32>} : memref<1x1x200x200xf32, #tpu.memory_space<vmem>>, vector<1x1x200x200xf32>,
    } else {
    }
    %3 = tpu.iota {dimensions = array<i32: 0>} : vector<31x200xi32>
    %4 = tpu.iota {dimensions = array<i32: 1>} : vector<31x200xi32>
    %5 = arith.subi %4, %3 : vector<31x200xi32>
    %6 = tpu.iota {dimensions = array<i32: 0>} : vector<200x32xi32>
    %7 = tpu.iota {dimensions = array<i32: 1>} : vector<200x32xi32>
    %8 = arith.subi %6, %7 : vector<200x32xi32>
    %cst = arith.constant 0.000000e+00 : f32
    %9 = vector.broadcast %cst : f32 to vector<1x31xf32>
    %c8_i32 = arith.constant 8 : i32
    %10 = arith.muli %arg0, %c8_i32 : i32
    %c2_i32 = arith.constant 2 : i32
    %11 = arith.muli %c2_i32, %arg1 : i32
    %c4_i32 = arith.constant 4 : i32
    %12 = arith.muli %11, %c4_i32 : i32
    %13 = arith.addi %10, %12 : i32
    %c0_i32_1 = arith.constant 0 : i32
    %14 = arith.addi %13, %c0_i32_1 : i32
    %15 = arith.index_cast %14 : i32 to index
    %16 = memref.load %arg2[%15] : memref<16xi32, #tpu.memory_space<smem>>
    %c0_i32_2 = arith.constant 0 : i32
    %17 = arith.addi %13, %c0_i32_2 : i32
    %c1_i32 = arith.constant 1 : i32
    %18 = arith.addi %17, %c1_i32 : i32
    %19 = arith.index_cast %18 : i32 to index
    %20 = memref.load %arg2[%19] : memref<16xi32, #tpu.memory_space<smem>>
    %c15_i32 = arith.constant 15 : i32
    %21 = arith.subi %16, %c15_i32 : i32
    %c15_i32_3 = arith.constant 15 : i32
    %22 = arith.subi %20, %c15_i32_3 : i32
    %23 = vector.broadcast %22 : i32 to vector<31x200xi32>
    %24 = arith.cmpi eq, %5, %23 : vector<31x200xi32>
    %25 = arith.extui %24 : vector<31x200xi1> to vector<31x200xi32>
    %26 = arith.sitofp %25 : vector<31x200xi32> to vector<31x200xf32>
    %c0 = arith.constant 0 : index
    %c0_4 = arith.constant 0 : index
    %c0_5 = arith.constant 0 : index
    %c0_6 = arith.constant 0 : index
    %27 = vector.load %arg3[%c0, %c0_4, %c0_5, %c0_6] : memref<1x4x31x31xf32, #tpu.memory_space<vmem>>, vector<1x1x31x31xf32>
    %28 = vector.shape_cast %27 : vector<1x1x31x31xf32> to vector<31x31xf32>
    %29 = tpu.concatenate %28, %9 in 0 : vector<31x31xf32>, vector<1x31xf32> -> vector<32x31xf32>
    %cst_7 = arith.constant dense<0.000000e+00> : vector<32x200xf32>
    %30 = tpu.matmul %29, %26, %cst_7 {dimension_numbers = #tpu.dot_dimension_numbers<[1], [0], [0], [1], [0, 0, 1, 1], [], []>} : vector<32x31xf32>, vector<31x200xf32>, vector<32x200xf32> -> vector<32x200xf32>
    %31 = vector.broadcast %21 : i32 to vector<200x32xi32>
    %32 = arith.cmpi eq, %8, %31 : vector<200x32xi32>
    %33 = arith.extui %32 : vector<200x32xi1> to vector<200x32xi32>
    %34 = arith.sitofp %33 : vector<200x32xi32> to vector<200x32xf32>
    %c2_i32_8 = arith.constant 2 : i32
    %35 = arith.addi %13, %c2_i32_8 : i32
    %36 = arith.index_cast %35 : i32 to index
    %37 = memref.load %arg2[%36] : memref<16xi32, #tpu.memory_space<smem>>
    %c2_i32_9 = arith.constant 2 : i32
    %38 = arith.addi %13, %c2_i32_9 : i32
    %c1_i32_10 = arith.constant 1 : i32
    %39 = arith.addi %38, %c1_i32_10 : i32
    %40 = arith.index_cast %39 : i32 to index
    %41 = memref.load %arg2[%40] : memref<16xi32, #tpu.memory_space<smem>>
    %c15_i32_11 = arith.constant 15 : i32
    %42 = arith.subi %37, %c15_i32_11 : i32
    %c15_i32_12 = arith.constant 15 : i32
    %43 = arith.subi %41, %c15_i32_12 : i32
    %44 = vector.broadcast %43 : i32 to vector<31x200xi32>
    %45 = arith.cmpi eq, %5, %44 : vector<31x200xi32>
    %46 = arith.extui %45 : vector<31x200xi1> to vector<31x200xi32>
    %47 = arith.sitofp %46 : vector<31x200xi32> to vector<31x200xf32>
    %c0_13 = arith.constant 0 : index
    %c1 = arith.constant 1 : index
    %c0_14 = arith.constant 0 : index
    %c0_15 = arith.constant 0 : index
    %48 = vector.load %arg3[%c0_13, %c1, %c0_14, %c0_15] : memref<1x4x31x31xf32, #tpu.memory_space<vmem>>, vector<1x1x31x31xf32>
    %49 = vector.shape_cast %48 : vector<1x1x31x31xf32> to vector<31x31xf32>
    %50 = tpu.concatenate %49, %9 in 0 : vector<31x31xf32>, vector<1x31xf32> -> vector<32x31xf32>
    %cst_16 = arith.constant dense<0.000000e+00> : vector<32x200xf32>
    %51 = tpu.matmul %50, %47, %cst_16 {dimension_numbers = #tpu.dot_dimension_numbers<[1], [0], [0], [1], [0, 0, 1, 1], [], []>} : vector<32x31xf32>, vector<31x200xf32>, vector<32x200xf32> -> vector<32x200xf32>
    %52 = vector.broadcast %42 : i32 to vector<200x32xi32>
    %53 = arith.cmpi eq, %8, %52 : vector<200x32xi32>
    %54 = arith.extui %53 : vector<200x32xi1> to vector<200x32xi32>
    %55 = arith.sitofp %54 : vector<200x32xi32> to vector<200x32xf32>
    %c4_i32_17 = arith.constant 4 : i32
    %56 = arith.addi %13, %c4_i32_17 : i32
    %57 = arith.index_cast %56 : i32 to index
    %58 = memref.load %arg2[%57] : memref<16xi32, #tpu.memory_space<smem>>
    %c4_i32_18 = arith.constant 4 : i32
    %59 = arith.addi %13, %c4_i32_18 : i32
    %c1_i32_19 = arith.constant 1 : i32
    %60 = arith.addi %59, %c1_i32_19 : i32
    %61 = arith.index_cast %60 : i32 to index
    %62 = memref.load %arg2[%61] : memref<16xi32, #tpu.memory_space<smem>>
    %c15_i32_20 = arith.constant 15 : i32
    %63 = arith.subi %58, %c15_i32_20 : i32
    %c15_i32_21 = arith.constant 15 : i32
    %64 = arith.subi %62, %c15_i32_21 : i32
    %65 = vector.broadcast %64 : i32 to vector<31x200xi32>
    %66 = arith.cmpi eq, %5, %65 : vector<31x200xi32>
    %67 = arith.extui %66 : vector<31x200xi1> to vector<31x200xi32>
    %68 = arith.sitofp %67 : vector<31x200xi32> to vector<31x200xf32>
    %c0_22 = arith.constant 0 : index
    %c2 = arith.constant 2 : index
    %c0_23 = arith.constant 0 : index
    %c0_24 = arith.constant 0 : index
    %69 = vector.load %arg3[%c0_22, %c2, %c0_23, %c0_24] : memref<1x4x31x31xf32, #tpu.memory_space<vmem>>, vector<1x1x31x31xf32>
    %70 = vector.shape_cast %69 : vector<1x1x31x31xf32> to vector<31x31xf32>
    %71 = tpu.concatenate %70, %9 in 0 : vector<31x31xf32>, vector<1x31xf32> -> vector<32x31xf32>
    %cst_25 = arith.constant dense<0.000000e+00> : vector<32x200xf32>
    %72 = tpu.matmul %71, %68, %cst_25 {dimension_numbers = #tpu.dot_dimension_numbers<[1], [0], [0], [1], [0, 0, 1, 1], [], []>} : vector<32x31xf32>, vector<31x200xf32>, vector<32x200xf32> -> vector<32x200xf32>
    %73 = vector.broadcast %63 : i32 to vector<200x32xi32>
    %74 = arith.cmpi eq, %8, %73 : vector<200x32xi32>
    %75 = arith.extui %74 : vector<200x32xi1> to vector<200x32xi32>
    %76 = arith.sitofp %75 : vector<200x32xi32> to vector<200x32xf32>
    %c6_i32 = arith.constant 6 : i32
    %77 = arith.addi %13, %c6_i32 : i32
    %78 = arith.index_cast %77 : i32 to index
    %79 = memref.load %arg2[%78] : memref<16xi32, #tpu.memory_space<smem>>
    %c6_i32_26 = arith.constant 6 : i32
    %80 = arith.addi %13, %c6_i32_26 : i32
    %c1_i32_27 = arith.constant 1 : i32
    %81 = arith.addi %80, %c1_i32_27 : i32
    %82 = arith.index_cast %81 : i32 to index
    %83 = memref.load %arg2[%82] : memref<16xi32, #tpu.memory_space<smem>>
    %c15_i32_28 = arith.constant 15 : i32
    %84 = arith.subi %79, %c15_i32_28 : i32
    %c15_i32_29 = arith.constant 15 : i32
    %85 = arith.subi %83, %c15_i32_29 : i32
    %86 = vector.broadcast %85 : i32 to vector<31x200xi32>
    %87 = arith.cmpi eq, %5, %86 : vector<31x200xi32>
    %88 = arith.extui %87 : vector<31x200xi1> to vector<31x200xi32>
    %89 = arith.sitofp %88 : vector<31x200xi32> to vector<31x200xf32>
    %c0_30 = arith.constant 0 : index
    %c3 = arith.constant 3 : index
    %c0_31 = arith.constant 0 : index
    %c0_32 = arith.constant 0 : index
    %90 = vector.load %arg3[%c0_30, %c3, %c0_31, %c0_32] : memref<1x4x31x31xf32, #tpu.memory_space<vmem>>, vector<1x1x31x31xf32>
    %91 = vector.shape_cast %90 : vector<1x1x31x31xf32> to vector<31x31xf32>
    %92 = tpu.concatenate %91, %9 in 0 : vector<31x31xf32>, vector<1x31xf32> -> vector<32x31xf32>
    %cst_33 = arith.constant dense<0.000000e+00> : vector<32x200xf32>
    %93 = tpu.matmul %92, %89, %cst_33 {dimension_numbers = #tpu.dot_dimension_numbers<[1], [0], [0], [1], [0, 0, 1, 1], [], []>} : vector<32x31xf32>, vector<31x200xf32>, vector<32x200xf32> -> vector<32x200xf32>
    %94 = vector.broadcast %84 : i32 to vector<200x32xi32>
    %95 = arith.cmpi eq, %8, %94 : vector<200x32xi32>
    %96 = arith.extui %95 : vector<200x32xi1> to vector<200x32xi32>
    %97 = arith.sitofp %96 : vector<200x32xi32> to vector<200x32xf32>
    %98 = tpu.concatenate %30, %51, %72, %93 in 0 : vector<32x200xf32>, vector<32x200xf32>, vector<32x200xf32>, vector<32x200xf32> -> vector<128x200xf32>
    %99 = tpu.concatenate %34, %55, %76, %97 in 1 : vector<200x32xf32>, vector<200x32xf32>, vector<200x32xf32>, vector<200x32xf32> -> vector<200x128xf32>
    %c0_34 = arith.constant 0 : index
    %c0_35 = arith.constant 0 : index
    %c0_36 = arith.constant 0 : index
    %c0_37 = arith.constant 0 : index
    %100 = vector.load %arg4[%c0_34, %c0_35, %c0_36, %c0_37] : memref<1x1x200x200xf32, #tpu.memory_space<vmem>>, vector<1x1x200x200xf32>
    %101 = vector.shape_cast %100 : vector<1x1x200x200xf32> to vector<200x200xf32>
    %cst_38 = arith.constant dense<0.000000e+00> : vector<200x200xf32>
    %102 = tpu.matmul %99, %98, %cst_38 {dimension_numbers = #tpu.dot_dimension_numbers<[1], [0], [0], [1], [0, 0, 1, 1], [], []>} : vector<200x128xf32>, vector<128x200xf32>, vector<200x200xf32> -> vector<200x200xf32>
    %103 = arith.addf %101, %102 : vector<200x200xf32>
    %c0_39 = arith.constant 0 : index
    %c0_40 = arith.constant 0 : index
    %c0_41 = arith.constant 0 : index
    %c0_42 = arith.constant 0 : index
    %104 = vector.load %arg4[%c0_39, %c0_40, %c0_41, %c0_42] : memref<1x1x200x200xf32, #tpu.memory_space<vmem>>, vector<1x1x200x200xf32>
    %105 = vector.shape_cast %104 : vector<1x1x200x200xf32> to vector<200x200xf32>
    %106 = vector.shape_cast %103 : vector<200x200xf32> to vector<1x1x200x200xf32>
    tpu.vector_store %arg4[%c0_39, %c0_40, %c0_41, %c0_42], %106 {strides = array<i32>} : memref<1x1x200x200xf32, #tpu.memory_space<vmem>>, vector<1x1x200x200xf32>,
    return
  }
  func.func @transform_0(%arg0: i32, %arg1: i32, %arg2: memref<16xi32, #tpu.memory_space<smem>>) -> (i32, i32, i32, i32) {
    %c0_i32 = arith.constant 0 : i32
    %c0_i32_0 = arith.constant 0 : i32
    %c0_i32_1 = arith.constant 0 : i32
    return %arg0, %arg1, %c0_i32, %c0_i32_0 : i32, i32, i32, i32
  }
  func.func @transform_1(%arg0: i32, %arg1: i32, %arg2: memref<16xi32, #tpu.memory_space<smem>>) -> (i32, i32, i32, i32) {
    %c0_i32 = arith.constant 0 : i32
    %c0_i32_0 = arith.constant 0 : i32
    %c0_i32_1 = arith.constant 0 : i32
    %c0_i32_2 = arith.constant 0 : i32
    return %arg0, %c0_i32, %c0_i32_0, %c0_i32_1 : i32, i32, i32, i32
  }
}

</mosaic_0001>

<llo_original>
// kernel: tpu_custom_call.1
$region0: #{tpu_custom_call.1}
  #allocation0 [shape = 'u32[]', space=smem, size = 0x4, offset = 0x4, fixed_abs, tag = 'smem constant byte address 0x4 - core index']
  #allocation1 [shape = 'u32[144,128]{1,0:T(1,128)}', space=vmem, size = 0x12000, scoped, tag = 'internal scratch']
  #allocation2 [shape = 's32[1]{0}', space=sflag, size = 0x4, scoped, tag = 'scoped memory for tpu_custom_call.1']
  #allocation3 [shape = 'u8[512]{0}', space=smem, size = 0x200, scoped, tag = 'prefetched SMEM operand 0']
  %s0 = inlined_call_operand.vmem [shape: s32[16], index: 0, kind: input, shape index: {}]
  %s1 = inlined_call_operand.vmem [shape: f32[2,4,31,31], index: 1, kind: input, shape index: {}]
  %s2 = inlined_call_operand.hbm [shape: f32[2,1,200,200], index: 2, kind: output, shape index: {}]
  %s3 = sld [smem:[#allocation0]]
  $region41: #{tpu_custom_call.1} parent=0
    _
  %s5 = ssub.s32 1, %s3
  %s6 = scalar_select 0, %s5, %s3
  %s7 = sshll.u32 %s0, 4
  %s8 = int_to_ptr.vmem [resolvable:$true] %s7
  %10 = dma.vmem_to_smem %s8, 16, [#allocation3], [#allocation2]
  %11 = dma.done [#allocation2], 16
  %12 = sfence
  $region1: #{tpu_custom_call.1} parent=0
    #allocation4 [shape = 'u8[409600]{0}', space=vmem, size = 0x64000, scoped, tag = 'output window, operand 0']
    #allocation5 [shape = 's32[2]{0}', space=sflag, size = 0x8, scoped, tag = 'scoped memory for tpu_custom_call.1']
    %13 = vsyncpa [#allocation5], 0
    %s14 = scalar_lea.sflag [#allocation5], 1
    %15 = vsyncpa %s14, 0
    loop: start=0, step=1, limit=4
    $region2: #{tpu_custom_call.1} parent=1 // loop_pre_header
      _
    $region3: #{tpu_custom_call.1} parent=1 // loop_header
      %s17 = sphi 0, %s21
      %p18 = scmp.ge.s32.totalorder %s17, 4
      %s24 = sphi 0, %s36
      %s25 = sphi 0, %s32
      %s26 = sphi 0, %s24
      %s27 = sphi 0, %s25
      %s28 = sphi 0, %s26
      %s29 = sphi 0, %s27
      %s41 = sphi 0, %s43
      %s44 = sphi 0, %s41
      %s45 = sphi 0, %s44
      %s61 = sphi 0, %s45
      %s67 = sphi 0, %s69
      %s70 = sphi 0, %s67
      %s71 = sphi 0, %s70
      %s87 = sphi 0, %s71
    $region4: #{tpu_custom_call.1} parent=1 // loop_header_branch
      %20 = sbr.rel (%p18) target = $region8
    $region5: #{tpu_custom_call.1} parent=1 // loop_body
      %s22 = ssub.s32 %s17, 1
      %s23 = ssub.s32 %s17, 2
      %s30 = sadd.s32 1, %s25
      %p31 = scmp.ge.s32.totalorder %s30, 1
      %s32 = scalar_select %p31, 0, %s30
      %s33 = sadd.s32 1, %s24
      %s34 = scalar_select %p31, %s33, %s24
      %p35 = scmp.ge.s32.totalorder %s34, 2
      %s36 = scalar_select %p35, 0, %s34
      %s37 = ssub.s32 %s24, %s36
      %s38 = ssub.s32 %s25, %s32
      %s39 = sor.u32 %s37, %s38
      %p40 = scmp.eq.s32.totalorder %s39, 0
      %s42 = sadd.s32 %s41, 1
      %s43 = scalar_select %p40, %s41, %s42
      %p46 = pneg %p40
      %p47 = scmp.eq.s32.totalorder %s17, 1
      %p48 = por %p46, %p47
      %p49 = scmp.ne.s32.totalorder %s41, %s44
      %p50 = scmp.eq.s32.totalorder %s17, 0
      %p51 = por %p49, %p50
      %p52 = scmp.ne.s32.totalorder %s41, %s44
      %p53 = scmp.eq.s32.totalorder %s22, 1
      %p54 = por %p52, %p53
      %p55 = scmp.ne.s32.totalorder %s44, %s45
      %p56 = scmp.eq.s32.totalorder %s22, 0
      %p57 = por %p55, %p56
      %p58 = scmp.ne.s32.totalorder %s44, %s45
      %p59 = scmp.eq.s32.totalorder %s23, 1
      %p60 = por %p58, %p59
      %p62 = scmp.ne.s32.totalorder %s45, %s61
      %p63 = scmp.eq.s32.totalorder %s23, 0
      %p64 = por %p62, %p63
      %s65 = ssub.s32 %s24, %s36
      %p66 = scmp.eq.s32.totalorder %s65, 0
      %s68 = sadd.s32 %s67, 1
      %s69 = scalar_select %p66, %s67, %s68
      %p72 = pneg %p66
      %p73 = scmp.eq.s32.totalorder %s17, 1
      %p74 = por %p72, %p73
      %p75 = scmp.ne.s32.totalorder %s67, %s70
      %p76 = scmp.eq.s32.totalorder %s17, 0
      %p77 = por %p75, %p76
      %p78 = scmp.ne.s32.totalorder %s67, %s70
      %p79 = scmp.eq.s32.totalorder %s22, 1
      %p80 = por %p78, %p79
      %p81 = scmp.ne.s32.totalorder %s70, %s71
      %p82 = scmp.eq.s32.totalorder %s22, 0
      %p83 = por %p81, %p82
      %p84 = scmp.ne.s32.totalorder %s70, %s71
      %p85 = scmp.eq.s32.totalorder %s23, 1
      %p86 = por %p84, %p85
      %p88 = scmp.ne.s32.totalorder %s71, %s87
      %p89 = scmp.eq.s32.totalorder %s23, 0
      %p90 = por %p88, %p89
      %p91 = scmp.le.s32.totalorder 1, %s17
      %p92 = scmp.lt.s32.totalorder %s17, 3
      %p93 = pnand %p91, %p92
      %p94 = pneg %p93
      // Predicated region
      $region9: #{tpu_custom_call.1} parent=5 // pred_check
        _
      $region10: #{tpu_custom_call.1} parent=5 // pred_check_branch
        %96 = sbr.rel (%p93) target = $region12
      $region11: #{tpu_custom_call.1} parent=5 // pred_region
        %s97 = ssub.s32 %s17, 1
      $region12: #{tpu_custom_call.1} parent=5 // pred_fallthru
        _
      %p98 = scmp.lt.s32.totalorder %s17, 2
      // Predicated region
      $region13: #{tpu_custom_call.1} parent=5 // pred_check
        %p99 = pneg %p98
      $region14: #{tpu_custom_call.1} parent=5 // pred_check_branch
        %101 = sbr.rel (%p99) target = $region16
      $region15: #{tpu_custom_call.1} parent=5 // pred_region
        // Predicated region
        $region17: #{tpu_custom_call.1} parent=15 // pred_check
          %p102 = pneg %p51
        $region18: #{tpu_custom_call.1} parent=15 // pred_check_branch
          %104 = sbr.rel (%p102) target = $region20
        $region19: #{tpu_custom_call.1} parent=15 // pred_region
          %s105 = smul.u32 4, %s25
          %p106 = scmp.lt.s32.totalorder %s24, 1
          %s107 = scalar_select %p106, %s24, 1
          %p108 = scmp.lt.s32.totalorder %s105, 3
          %s109 = scalar_select %p108, %s105, 3
          %s110 = smul.addr %s109, 4
          %s111 = smul.addr %s107, 16
          %s112 = sadd.s32 %s110, %s111
          %s113 = smul.addr %s112, 8
          %s114 = scalar_lea.vmem %s1, %s113
          %s115 = smul.u32 4, %s25
        $region20: #{tpu_custom_call.1} parent=15 // pred_fallthru
          _
      $region16: #{tpu_custom_call.1} parent=5 // pred_fallthru
        _
      %p116 = scmp.le.s32.totalorder 1, %s17
      %p117 = scmp.lt.s32.totalorder %s17, 3
      %p118 = pnand %p116, %p117
      %p119 = pneg %p118
      // Predicated region
      $region21: #{tpu_custom_call.1} parent=5 // pred_check
        _
      $region22: #{tpu_custom_call.1} parent=5 // pred_check_branch
        %121 = sbr.rel (%p118) target = $region24
      $region23: #{tpu_custom_call.1} parent=5 // pred_region
        %s122 = ssub.s32 %s17, 1
        %s123 = smul.u32 4, %s27
        %p124 = scmp.lt.s32.totalorder %s26, 1
        %s125 = scalar_select %p124, %s26, 1
        %p126 = scmp.lt.s32.totalorder %s123, 3
        %s127 = scalar_select %p126, %s123, 3
        %s128 = smul.addr %s127, 4
        %s129 = smul.addr %s125, 16
        %s130 = sadd.s32 %s128, %s129
        %s131 = smul.addr %s130, 8
        %s132 = scalar_lea.vmem %s1, %s131
        %p133 = pneg %p57
        %p134 = pneg %p54
        %p135 = pneg %p83
        %p136 = pneg %p80
        %s137 = sand.u32 %s70, 1
        %s138 = scalar_lea.sflag [#allocation5], %s137
        %s139 = sand.u32 %s70, 1
        %s140 = smul.addr %s139, 400
        %s141 = scalar_lea.vmem [#allocation4], %s140
        %s142 = smul.u32 4, %s27
        %p143 = scmp.lt.s32.totalorder %s26, 1
        %s144 = scalar_select %p143, %s26, 1
        %p145 = scmp.lt.s32.totalorder %s142, 3
        %s146 = scalar_select %p145, %s142, 3
        %s147 = smul.addr %s146, 4
        %s148 = smul.addr %s144, 16
        %s149 = sadd.s32 %s147, %s148
        %s150 = smul.addr %s149, 8
        %s151 = scalar_lea.vmem %s1, %s150
        %s152 = smul.u32 4, %s27
        %p153 = scmp.eq.s32.totalorder %s27, 0
        // Predicated region
        $region25: #{tpu_custom_call.1} parent=23 // pred_check
          %p154 = pneg %p153
        $region26: #{tpu_custom_call.1} parent=23 // pred_check_branch
          %156 = sbr.rel (%p154) target = $region28
        $region27: #{tpu_custom_call.1} parent=23 // pred_region
          %157 = vst [vmem:[%s141] sm:$0xff] 0.0
          %vm158 = vcmask 588800
          %159 = vst.msk [vmem:[%s141 + $0x8] sm:$0xff] %vm158, 0.0
          %160 = vst [vmem:[%s141 + $0x10] sm:$0xff] 0.0
          %161 = vst.msk [vmem:[%s141 + $0x18] sm:$0xff] %vm158, 0.0
          %162 = vst [vmem:[%s141 + $0x20] sm:$0xff] 0.0
          %163 = vst.msk [vmem:[%s141 + $0x28] sm:$0xff] %vm158, 0.0
          %164 = vst [vmem:[%s141 + $0x30] sm:$0xff] 0.0
          %165 = vst.msk [vmem:[%s141 + $0x38] sm:$0xff] %vm158, 0.0
          %166 = vst [vmem:[%s141 + $0x40] sm:$0xff] 0.0
          %167 = vst.msk [vmem:[%s141 + $0x48] sm:$0xff] %vm158, 0.0
          %168 = vst [vmem:[%s141 + $0x50] sm:$0xff] 0.0
          %169 = vst.msk [vmem:[%s141 + $0x58] sm:$0xff] %vm158, 0.0
          %170 = vst [vmem:[%s141 + $0x60] sm:$0xff] 0.0
          %171 = vst.msk [vmem:[%s141 + $0x68] sm:$0xff] %vm158, 0.0
          %172 = vst [vmem:[%s141 + $0x70] sm:$0xff] 0.0
          %173 = vst.msk [vmem:[%s141 + $0x78] sm:$0xff] %vm158, 0.0
          %174 = vst [vmem:[%s141 + $0x80] sm:$0xff] 0.0
          %175 = vst.msk [vmem:[%s141 + $0x88] sm:$0xff] %vm158, 0.0
          %176 = vst [vmem:[%s141 + $0x90] sm:$0xff] 0.0
          %177 = vst.msk [vmem:[%s141 + $0x98] sm:$0xff] %vm158, 0.0
          %178 = vst [vmem:[%s141 + $0xa0] sm:$0xff] 0.0
          %179 = vst.msk [vmem:[%s141 + $0xa8] sm:$0xff] %vm158, 0.0
          %180 = vst [vmem:[%s141 + $0xb0] sm:$0xff] 0.0
          %181 = vst.msk [vmem:[%s141 + $0xb8] sm:$0xff] %vm158, 0.0
          %182 = vst [vmem:[%s141 + $0xc0] sm:$0xff] 0.0
          %183 = vst.msk [vmem:[%s141 + $0xc8] sm:$0xff] %vm158, 0.0
          %184 = vst [vmem:[%s141 + $0xd0] sm:$0xff] 0.0
          %185 = vst.msk [vmem:[%s141 + $0xd8] sm:$0xff] %vm158, 0.0
          %186 = vst [vmem:[%s141 + $0xe0] sm:$0xff] 0.0
          %187 = vst.msk [vmem:[%s141 + $0xe8] sm:$0xff] %vm158, 0.0
          %188 = vst [vmem:[%s141 + $0xf0] sm:$0xff] 0.0
          %189 = vst.msk [vmem:[%s141 + $0xf8] sm:$0xff] %vm158, 0.0
          %190 = vst [vmem:[%s141 + $0x100] sm:$0xff] 0.0
          %191 = vst.msk [vmem:[%s141 + $0x108] sm:$0xff] %vm158, 0.0
          %192 = vst [vmem:[%s141 + $0x110] sm:$0xff] 0.0
          %193 = vst.msk [vmem:[%s141 + $0x118] sm:$0xff] %vm158, 0.0
          %194 = vst [vmem:[%s141 + $0x120] sm:$0xff] 0.0
          %195 = vst.msk [vmem:[%s141 + $0x128] sm:$0xff] %vm158, 0.0
          %196 = vst [vmem:[%s141 + $0x130] sm:$0xff] 0.0
          %197 = vst.msk [vmem:[%s141 + $0x138] sm:$0xff] %vm158, 0.0
          %198 = vst [vmem:[%s141 + $0x140] sm:$0xff] 0.0
          %199 = vst.msk [vmem:[%s141 + $0x148] sm:$0xff] %vm158, 0.0
          %200 = vst [vmem:[%s141 + $0x150] sm:$0xff] 0.0
          %201 = vst.msk [vmem:[%s141 + $0x158] sm:$0xff] %vm158, 0.0
          %202 = vst [vmem:[%s141 + $0x160] sm:$0xff] 0.0
          %203 = vst.msk [vmem:[%s141 + $0x168] sm:$0xff] %vm158, 0.0
          %204 = vst [vmem:[%s141 + $0x170] sm:$0xff] 0.0
          %205 = vst.msk [vmem:[%s141 + $0x178] sm:$0xff] %vm158, 0.0
          %206 = vst [vmem:[%s141 + $0x180] sm:$0xff] 0.0
          %207 = vst.msk [vmem:[%s141 + $0x188] sm:$0xff] %vm158, 0.0
        $region28: #{tpu_custom_call.1} parent=23 // pred_fallthru
          _
        %v208 = vlaneseq
        %v209 = vshrl.u32 %v208, 7
        %v210 = vadd.s32 %v209, 8
        %v211 = vadd.s32 %v209, 16
        %v212 = vadd.s32 %v209, 24
        %v213 = vlaneseq
        %v214 = vand.u32 %v213, 127
        %v215 = vadd.s32 %v214, 128
        %v216 = vsub.s32 %v214, %v209
        %v217 = vsub.s32 %v215, %v209
        %v218 = vsub.s32 %v214, %v210
        %v219 = vsub.s32 %v215, %v210
        %v220 = vsub.s32 %v214, %v211
        %v221 = vsub.s32 %v215, %v211
        %v222 = vsub.s32 %v214, %v212
        %v223 = vsub.s32 %v215, %v212
        %v224 = vadd.s32 %v209, 32
        %v225 = vadd.s32 %v209, 40
        %v226 = vadd.s32 %v209, 48
        %v227 = vadd.s32 %v209, 56
        %v228 = vadd.s32 %v209, 64
        %v229 = vadd.s32 %v209, 72
        %v230 = vadd.s32 %v209, 80
        %v231 = vadd.s32 %v209, 88
        %v232 = vadd.s32 %v209, 96
        %v233 = vadd.s32 %v209, 104
        %v234 = vadd.s32 %v209, 112
        %v235 = vadd.s32 %v209, 120
        %v236 = vadd.s32 %v209, 128
        %v237 = vadd.s32 %v209, 136
        %v238 = vadd.s32 %v209, 144
        %v239 = vadd.s32 %v209, 152
        %v240 = vadd.s32 %v209, 160
        %v241 = vadd.s32 %v209, 168
        %v242 = vadd.s32 %v209, 176
        %v243 = vadd.s32 %v209, 184
        %v244 = vadd.s32 %v209, 192
        %v245 = vsub.s32 %v209, %v214
        %v246 = vsub.s32 %v210, %v214
        %v247 = vsub.s32 %v211, %v214
        %v248 = vsub.s32 %v212, %v214
        %v249 = vsub.s32 %v224, %v214
        %v250 = vsub.s32 %v225, %v214
        %v251 = vsub.s32 %v226, %v214
        %v252 = vsub.s32 %v227, %v214
        %v253 = vsub.s32 %v228, %v214
        %v254 = vsub.s32 %v229, %v214
        %v255 = vsub.s32 %v230, %v214
        %v256 = vsub.s32 %v231, %v214
        %v257 = vsub.s32 %v232, %v214
        %v258 = vsub.s32 %v233, %v214
        %v259 = vsub.s32 %v234, %v214
        %v260 = vsub.s32 %v235, %v214
        %v261 = vsub.s32 %v236, %v214
        %v262 = vsub.s32 %v237, %v214
        %v263 = vsub.s32 %v238, %v214
        %v264 = vsub.s32 %v239, %v214
        %v265 = vsub.s32 %v240, %v214
        %v266 = vsub.s32 %v241, %v214
        %v267 = vsub.s32 %v242, %v214
        %v268 = vsub.s32 %v243, %v214
        %v269 = vsub.s32 %v244, %v214
        %s270 = smul.u32 %s26, 8
        %s271 = smul.u32 %s27, 8
        %s272 = sadd.s32 %s270, %s271
        %s273 = sld [smem:[#allocation3 + %s272]]
        %s274 = sadd.s32 %s272, 1
        %s275 = sld [smem:[#allocation3 + %s274]]
        %s276 = ssub.s32 %s273, 15
        %s277 = ssub.s32 %s275, 15
        %v278 = vstv %s277
        %vm279 = vcmp.eq.s32.totalorder %v216, %v278
        %vm280 = vcmp.eq.s32.totalorder %v217, %v278
        %vm281 = vcmp.eq.s32.totalorder %v218, %v278
        %vm282 = vcmp.eq.s32.totalorder %v219, %v278
        %vm283 = vcmp.eq.s32.totalorder %v220, %v278
        %vm284 = vcmp.eq.s32.totalorder %v221, %v278
        %vm285 = vcmp.eq.s32.totalorder %v222, %v278
        %vm286 = vcmp.eq.s32.totalorder %v223, %v278
        %v287 = vsel %vm279, 1, 0
        %v288 = vsel %vm280, 1, 0
        %v289 = vsel %vm281, 1, 0
        %v290 = vsel %vm282, 1, 0
        %v291 = vsel %vm283, 1, 0
        %v292 = vsel %vm284, 1, 0
        %v293 = vsel %vm285, 1, 0
        %v294 = vsel %vm286, 1, 0
        %v295 = vcvt.s32.f32 %v287
        %v296 = vcvt.s32.f32 %v288
        %v297 = vcvt.s32.f32 %v289
        %v298 = vcvt.s32.f32 %v290
        %v299 = vcvt.s32.f32 %v291
        %v300 = vcvt.s32.f32 %v292
        %v301 = vcvt.s32.f32 %v293
        %v302 = vcvt.s32.f32 %v294
        %v303 = vld [vmem:[%s151] sm:$0xff]
        %v304 = vld [vmem:[%s151 + $0x8] sm:$0xff]
        %v305 = vld [vmem:[%s151 + $0x10] sm:$0xff]
        %v306 = vld [vmem:[%s151 + $0x18] sm:$0x7f]
        %vm307 = vcmask 1046528
        %v308 = vsel %vm307, %v306, 0.0
        %vm309 = vcmask 252928
        %v311 = vsel %vm309, %v303, 0
        %v314 = vsel %vm309, %v304, 0
        %v317 = vsel %vm309, %v305, 0
        %v320 = vsel %vm309, %v308, 0
        %v323 = vsel %vm307, %v301, 0
        %v326 = vsel %vm307, %v302, 0
        %328 = vmatprep.subr.mxu0 %v296
        %329 = vmatpush1.msra.mxu0 %v295
        %330 = vmatprep.subr.mxu0 %v298
        %331 = vmatpush1.msra.mxu0 %v297
        %332 = vmatprep.subr.mxu0 %v300
        %333 = vmatpush1.msra.mxu0 %v299
        %334 = vmatprep.subr.mxu0 %v326
        %335 = vmatpush1.msra.mxu0 %v323
        %336 = vmatprep.subr.mxu0 0.0
        %337 = vmatpush1.msra.mxu0 0.0
        %338 = vmatprep.subr.mxu0 0.0
        %339 = vmatpush1.msra.mxu0 0.0
        %340 = vmatprep.subr.mxu0 0.0
        %341 = vmatpush1.msra.mxu0 0.0
        %342 = vmatprep.subr.mxu0 0.0
        %343 = vmatpush1.msra.mxu0 0.0
        %344 = vmatprep.subr.mxu0 0.0
        %345 = vmatpush1.msra.mxu0 0.0
        %346 = vmatprep.subr.mxu0 0.0
        %347 = vmatpush1.msra.mxu0 0.0
        %348 = vmatprep.subr.mxu0 0.0
        %349 = vmatpush1.msra.mxu0 0.0
        %350 = vmatprep.subr.mxu0 0.0
        %351 = vmatpush1.msra.mxu0 0.0
        %352 = vmatprep.subr.mxu0 0.0
        %353 = vmatpush1.msra.mxu0 0.0
        %354 = vmatprep.subr.mxu0 0.0
        %355 = vmatpush1.msra.mxu0 0.0
        %356 = vmatprep.subr.mxu0 0.0
        %357 = vmatpush1.msra.mxu0 0.0
        %358 = vmatprep.subr.mxu0 0.0
        %359 = vmatpush1.msra.mxu0 0.0
        %360 = vmatprep.subr.mxu0 0.0
        %361 = vmatpush1.msra.mxu0 0.0
        %362 = vmatprep.subr.mxu0 0.0
        %363 = vmatpush1.msra.mxu0 0.0
        %364 = vmatprep.subr.mxu0 0.0
        %365 = vmatpush1.msra.mxu0 0.0
        %366 = vmatprep.subr.mxu0 0.0
        %367 = vmatpush1.msra.mxu0 0.0
        %368 = vmatprep.subr.mxu0 0.0
        %369 = vmatpush1.msra.mxu0 0.0
        %370 = vmatprep.subr.mxu0 0.0
        %371 = vmatpush1.msra.mxu0 0.0
        %372 = vmatprep.subr.mxu0 0.0
        %373 = vmatpush1.msra.mxu0 0.0
        %374 = vmatprep.subr.mxu0 0.0
        %375 = vmatpush1.msra.mxu0 0.0
        %376 = vmatprep.subr.mxu0 0.0
        %377 = vmatpush1.msra.mxu0 0.0
        %378 = vmatprep.subr.mxu0 0.0
        %379 = vmatpush1.msra.mxu0 0.0
        %380 = vmatprep.subr.mxu0 0.0
        %381 = vmatpush1.msra.mxu0 0.0
        %382 = vmatprep.subr.mxu0 0.0
        %383 = vmatpush1.msra.mxu0 0.0
        %384 = vmatprep.subr.mxu0 0.0
        %385 = vmatpush1.msra.mxu0 0.0
        %386 = vmatprep.subr.mxu0 0.0
        %387 = vmatpush1.msra.mxu0 0.0
        %388 = vmatprep.subr.mxu0 0.0
        %389 = vmatpush1.msra.mxu0 0.0
        %390 = vmatprep.subr.mxu0 0.0
        %391 = vmatpush1.msra.mxu0 0.0
        %392 = vmatprep.mubr.f32.mxu0 0.0
        %393 = vmatmul.mubr.f32.gmra.mrb[0].mxu0 %v311
        %v394 = vpop.f32.mrb[0].mxu0
        %v395 = vadd.f32 0.0, %v394
        %v396 = vpop.f32.mrb[0].mxu0
        %v397 = vadd.f32 0.0, %v396
        %398 = vmatprep.mubr.f32.mxu0 0.0
        %399 = vmatmul.mubr.f32.gmra.mrb[0].mxu0 %v314
        %v400 = vpop.f32.mrb[0].mxu0
        %v401 = vadd.f32 0.0, %v400
        %v402 = vpop.f32.mrb[0].mxu0
        %v403 = vadd.f32 0.0, %v402
        %404 = vmatprep.mubr.f32.mxu0 0.0
        %405 = vmatmul.mubr.f32.gmra.mrb[0].mxu0 %v317
        %v406 = vpop.f32.mrb[0].mxu0
        %v407 = vadd.f32 0.0, %v406
        %v408 = vpop.f32.mrb[0].mxu0
        %v409 = vadd.f32 0.0, %v408
        %410 = vmatprep.mubr.f32.mxu0 0.0
        %411 = vmatmul.mubr.f32.gmra.mrb[0].mxu0 %v320
        %v412 = vpop.f32.mrb[0].mxu0
        %v413 = vadd.f32 0.0, %v412
        %v414 = vpop.f32.mrb[0].mxu0
        %v415 = vadd.f32 0.0, %v414
        %416 = vdwg.mxu0
        %v417 = vstv %s276
        %vm418 = vcmp.eq.s32.totalorder %v245, %v417
        %vm419 = vcmp.eq.s32.totalorder %v246, %v417
        %vm420 = vcmp.eq.s32.totalorder %v247, %v417
        %vm421 = vcmp.eq.s32.totalorder %v248, %v417
        %vm422 = vcmp.eq.s32.totalorder %v249, %v417
        %vm423 = vcmp.eq.s32.totalorder %v250, %v417
        %vm424 = vcmp.eq.s32.totalorder %v251, %v417
        %vm425 = vcmp.eq.s32.totalorder %v252, %v417
        %vm426 = vcmp.eq.s32.totalorder %v253, %v417
        %vm427 = vcmp.eq.s32.totalorder %v254, %v417
        %vm428 = vcmp.eq.s32.totalorder %v255, %v417
        %vm429 = vcmp.eq.s32.totalorder %v256, %v417
        %vm430 = vcmp.eq.s32.totalorder %v257, %v417
        %vm431 = vcmp.eq.s32.totalorder %v258, %v417
        %vm432 = vcmp.eq.s32.totalorder %v259, %v417
        %vm433 = vcmp.eq.s32.totalorder %v260, %v417
        %vm434 = vcmp.eq.s32.totalorder %v261, %v417
        %vm435 = vcmp.eq.s32.totalorder %v262, %v417
        %vm436 = vcmp.eq.s32.totalorder %v263, %v417
        %vm437 = vcmp.eq.s32.totalorder %v264, %v417
        %vm438 = vcmp.eq.s32.totalorder %v265, %v417
        %vm439 = vcmp.eq.s32.totalorder %v266, %v417
        %vm440 = vcmp.eq.s32.totalorder %v267, %v417
        %vm441 = vcmp.eq.s32.totalorder %v268, %v417
        %vm442 = vcmp.eq.s32.totalorder %v269, %v417
        %v443 = vsel %vm418, 1, 0
        %v444 = vsel %vm419, 1, 0
        %v445 = vsel %vm420, 1, 0
        %v446 = vsel %vm421, 1, 0
        %v447 = vsel %vm422, 1, 0
        %v448 = vsel %vm423, 1, 0
        %v449 = vsel %vm424, 1, 0
        %v450 = vsel %vm425, 1, 0
        %v451 = vsel %vm426, 1, 0
        %v452 = vsel %vm427, 1, 0
        %v453 = vsel %vm428, 1, 0
        %v454 = vsel %vm429, 1, 0
        %v455 = vsel %vm430, 1, 0
        %v456 = vsel %vm431, 1, 0
        %v457 = vsel %vm432, 1, 0
        %v458 = vsel %vm433, 1, 0
        %v459 = vsel %vm434, 1, 0
        %v460 = vsel %vm435, 1, 0
        %v461 = vsel %vm436, 1, 0
        %v462 = vsel %vm437, 1, 0
        %v463 = vsel %vm438, 1, 0
        %v464 = vsel %vm439, 1, 0
        %v465 = vsel %vm440, 1, 0
        %v466 = vsel %vm441, 1, 0
        %v467 = vsel %vm442, 1, 0
        %v468 = vcvt.s32.f32 %v443
        %v469 = vcvt.s32.f32 %v444
        %v470 = vcvt.s32.f32 %v445
        %v471 = vcvt.s32.f32 %v446
        %v472 = vcvt.s32.f32 %v447
        %v473 = vcvt.s32.f32 %v448
        %v474 = vcvt.s32.f32 %v449
        %v475 = vcvt.s32.f32 %v450
        %v476 = vcvt.s32.f32 %v451
        %v477 = vcvt.s32.f32 %v452
        %v478 = vcvt.s32.f32 %v453
        %v479 = vcvt.s32.f32 %v454
        %v480 = vcvt.s32.f32 %v455
        %v481 = vcvt.s32.f32 %v456
        %v482 = vcvt.s32.f32 %v457
        %v483 = vcvt.s32.f32 %v458
        %v484 = vcvt.s32.f32 %v459
        %v485 = vcvt.s32.f32 %v460
        %v486 = vcvt.s32.f32 %v461
        %v487 = vcvt.s32.f32 %v462
        %v488 = vcvt.s32.f32 %v463
        %v489 = vcvt.s32.f32 %v464
        %v490 = vcvt.s32.f32 %v465
        %v491 = vcvt.s32.f32 %v466
        %v492 = vcvt.s32.f32 %v467
        %s493 = sadd.s32 %s272, 2
        %s494 = sld [smem:[#allocation3 + %s493]]
        %s495 = sadd.s32 %s272, 3
        %s496 = sld [smem:[#allocation3 + %s495]]
        %s497 = ssub.s32 %s494, 15
        %s498 = ssub.s32 %s496, 15
        %v499 = vstv %s498
        %vm500 = vcmp.eq.s32.totalorder %v216, %v499
        %vm501 = vcmp.eq.s32.totalorder %v217, %v499
        %vm502 = vcmp.eq.s32.totalorder %v218, %v499
        %vm503 = vcmp.eq.s32.totalorder %v219, %v499
        %vm504 = vcmp.eq.s32.totalorder %v220, %v499
        %vm505 = vcmp.eq.s32.totalorder %v221, %v499
        %vm506 = vcmp.eq.s32.totalorder %v222, %v499
        %vm507 = vcmp.eq.s32.totalorder %v223, %v499
        %v508 = vsel %vm500, 1, 0
        %v509 = vsel %vm501, 1, 0
        %v510 = vsel %vm502, 1, 0
        %v511 = vsel %vm503, 1, 0
        %v512 = vsel %vm504, 1, 0
        %v513 = vsel %vm505, 1, 0
        %v514 = vsel %vm506, 1, 0
        %v515 = vsel %vm507, 1, 0
        %v516 = vcvt.s32.f32 %v508
        %v517 = vcvt.s32.f32 %v509
        %v518 = vcvt.s32.f32 %v510
        %v519 = vcvt.s32.f32 %v511
        %v520 = vcvt.s32.f32 %v512
        %v521 = vcvt.s32.f32 %v513
        %v522 = vcvt.s32.f32 %v514
        %v523 = vcvt.s32.f32 %v515
        %s524 = scalar_lea.vmem %s151, 32
        %v525 = vld [vmem:[%s524] sm:$0xff]
        %v526 = vld [vmem:[%s524 + $0x8] sm:$0xff]
        %v527 = vld [vmem:[%s524 + $0x10] sm:$0xff]
        %v528 = vld [vmem:[%s524 + $0x18] sm:$0x7f]
        %v529 = vsel %vm307, %v528, 0.0
        %v531 = vsel %vm309, %v525, 0
        %v534 = vsel %vm309, %v526, 0
        %v537 = vsel %vm309, %v527, 0
        %v540 = vsel %vm309, %v529, 0
        %v543 = vsel %vm307, %v522, 0
        %v546 = vsel %vm307, %v523, 0
        %548 = vmatprep.subr.mxu0 %v517
        %549 = vmatpush1.msra.mxu0 %v516
        %550 = vmatprep.subr.mxu0 %v519
        %551 = vmatpush1.msra.mxu0 %v518
        %552 = vmatprep.subr.mxu0 %v521
        %553 = vmatpush1.msra.mxu0 %v520
        %554 = vmatprep.subr.mxu0 %v546
        %555 = vmatpush1.msra.mxu0 %v543
        %556 = vmatprep.subr.mxu0 0.0
        %557 = vmatpush1.msra.mxu0 0.0
        %558 = vmatprep.subr.mxu0 0.0
        %559 = vmatpush1.msra.mxu0 0.0
        %560 = vmatprep.subr.mxu0 0.0
        %561 = vmatpush1.msra.mxu0 0.0
        %562 = vmatprep.subr.mxu0 0.0
        %563 = vmatpush1.msra.mxu0 0.0
        %564 = vmatprep.subr.mxu0 0.0
        %565 = vmatpush1.msra.mxu0 0.0
        %566 = vmatprep.subr.mxu0 0.0
        %567 = vmatpush1.msra.mxu0 0.0
        %568 = vmatprep.subr.mxu0 0.0
        %569 = vmatpush1.msra.mxu0 0.0
        %570 = vmatprep.subr.mxu0 0.0
        %571 = vmatpush1.msra.mxu0 0.0
        %572 = vmatprep.subr.mxu0 0.0
        %573 = vmatpush1.msra.mxu0 0.0
        %574 = vmatprep.subr.mxu0 0.0
        %575 = vmatpush1.msra.mxu0 0.0
        %576 = vmatprep.subr.mxu0 0.0
        %577 = vmatpush1.msra.mxu0 0.0
        %578 = vmatprep.subr.mxu0 0.0
        %579 = vmatpush1.msra.mxu0 0.0
        %580 = vmatprep.subr.mxu0 0.0
        %581 = vmatpush1.msra.mxu0 0.0
        %582 = vmatprep.subr.mxu0 0.0
        %583 = vmatpush1.msra.mxu0 0.0
        %584 = vmatprep.subr.mxu0 0.0
        %585 = vmatpush1.msra.mxu0 0.0
        %586 = vmatprep.subr.mxu0 0.0
        %587 = vmatpush1.msra.mxu0 0.0
        %588 = vmatprep.subr.mxu0 0.0
        %589 = vmatpush1.msra.mxu0 0.0
        %590 = vmatprep.subr.mxu0 0.0
        %591 = vmatpush1.msra.mxu0 0.0
        %592 = vmatprep.subr.mxu0 0.0
        %593 = vmatpush1.msra.mxu0 0.0
        %594 = vmatprep.subr.mxu0 0.0
        %595 = vmatpush1.msra.mxu0 0.0
        %596 = vmatprep.subr.mxu0 0.0
        %597 = vmatpush1.msra.mxu0 0.0
        %598 = vmatprep.subr.mxu0 0.0
        %599 = vmatpush1.msra.mxu0 0.0
        %600 = vmatprep.subr.mxu0 0.0
        %601 = vmatpush1.msra.mxu0 0.0
        %602 = vmatprep.subr.mxu0 0.0
        %603 = vmatpush1.msra.mxu0 0.0
        %604 = vmatprep.subr.mxu0 0.0
        %605 = vmatpush1.msra.mxu0 0.0
        %606 = vmatprep.subr.mxu0 0.0
        %607 = vmatpush1.msra.mxu0 0.0
        %608 = vmatprep.subr.mxu0 0.0
        %609 = vmatpush1.msra.mxu0 0.0
        %610 = vmatprep.subr.mxu0 0.0
        %611 = vmatpush1.msra.mxu0 0.0
        %612 = vmatprep.mubr.f32.mxu0 0.0
        %613 = vmatmul.mubr.f32.gmra.mrb[0].mxu0 %v531
        %v614 = vpop.f32.mrb[0].mxu0
        %v615 = vadd.f32 0.0, %v614
        %v616 = vpop.f32.mrb[0].mxu0
        %v617 = vadd.f32 0.0, %v616
        %618 = vmatprep.mubr.f32.mxu0 0.0
        %619 = vmatmul.mubr.f32.gmra.mrb[0].mxu0 %v534
        %v620 = vpop.f32.mrb[0].mxu0
        %v621 = vadd.f32 0.0, %v620
        %v622 = vpop.f32.mrb[0].mxu0
        %v623 = vadd.f32 0.0, %v622
        %624 = vmatprep.mubr.f32.mxu0 0.0
        %625 = vmatmul.mubr.f32.gmra.mrb[0].mxu0 %v537
        %v626 = vpop.f32.mrb[0].mxu0
        %v627 = vadd.f32 0.0, %v626
        %v628 = vpop.f32.mrb[0].mxu0
        %v629 = vadd.f32 0.0, %v628
        %630 = vmatprep.mubr.f32.mxu0 0.0
        %631 = vmatmul.mubr.f32.gmra.mrb[0].mxu0 %v540
        %v632 = vpop.f32.mrb[0].mxu0
        %v633 = vadd.f32 0.0, %v632
        %v634 = vpop.f32.mrb[0].mxu0
        %v635 = vadd.f32 0.0, %v634
        %636 = vdwg.mxu0
        %v637 = vstv %s497
        %vm638 = vcmp.eq.s32.totalorder %v245, %v637
        %vm639 = vcmp.eq.s32.totalorder %v246, %v637
        %vm640 = vcmp.eq.s32.totalorder %v247, %v637
        %vm641 = vcmp.eq.s32.totalorder %v248, %v637
        %vm642 = vcmp.eq.s32.totalorder %v249, %v637
        %vm643 = vcmp.eq.s32.totalorder %v250, %v637
        %vm644 = vcmp.eq.s32.totalorder %v251, %v637
        %vm645 = vcmp.eq.s32.totalorder %v252, %v637
        %vm646 = vcmp.eq.s32.totalorder %v253, %v637
        %vm647 = vcmp.eq.s32.totalorder %v254, %v637
        %vm648 = vcmp.eq.s32.totalorder %v255, %v637
        %vm649 = vcmp.eq.s32.totalorder %v256, %v637
        %vm650 = vcmp.eq.s32.totalorder %v257, %v637
        %vm651 = vcmp.eq.s32.totalorder %v258, %v637
        %vm652 = vcmp.eq.s32.totalorder %v259, %v637
        %vm653 = vcmp.eq.s32.totalorder %v260, %v637
        %vm654 = vcmp.eq.s32.totalorder %v261, %v637
        %vm655 = vcmp.eq.s32.totalorder %v262, %v637
        %vm656 = vcmp.eq.s32.totalorder %v263, %v637
        %vm657 = vcmp.eq.s32.totalorder %v264, %v637
        %vm658 = vcmp.eq.s32.totalorder %v265, %v637
        %vm659 = vcmp.eq.s32.totalorder %v266, %v637
        %vm660 = vcmp.eq.s32.totalorder %v267, %v637
        %vm661 = vcmp.eq.s32.totalorder %v268, %v637
        %vm662 = vcmp.eq.s32.totalorder %v269, %v637
        %v663 = vsel %vm638, 1, 0
        %v664 = vsel %vm639, 1, 0
        %v665 = vsel %vm640, 1, 0
        %v666 = vsel %vm641, 1, 0
        %v667 = vsel %vm642, 1, 0
        %v668 = vsel %vm643, 1, 0
        %v669 = vsel %vm644, 1, 0
        %v670 = vsel %vm645, 1, 0
        %v671 = vsel %vm646, 1, 0
        %v672 = vsel %vm647, 1, 0
        %v673 = vsel %vm648, 1, 0
        %v674 = vsel %vm649, 1, 0
        %v675 = vsel %vm650, 1, 0
        %v676 = vsel %vm651, 1, 0
        %v677 = vsel %vm652, 1, 0
        %v678 = vsel %vm653, 1, 0
        %v679 = vsel %vm654, 1, 0
        %v680 = vsel %vm655, 1, 0
        %v681 = vsel %vm656, 1, 0
        %v682 = vsel %vm657, 1, 0
        %v683 = vsel %vm658, 1, 0
        %v684 = vsel %vm659, 1, 0
        %v685 = vsel %vm660, 1, 0
        %v686 = vsel %vm661, 1, 0
        %v687 = vsel %vm662, 1, 0
        %v688 = vcvt.s32.f32 %v663
        %v689 = vcvt.s32.f32 %v664
        %v690 = vcvt.s32.f32 %v665
        %v691 = vcvt.s32.f32 %v666
        %v692 = vcvt.s32.f32 %v667
        %v693 = vcvt.s32.f32 %v668
        %v694 = vcvt.s32.f32 %v669
        %v695 = vcvt.s32.f32 %v670
        %v696 = vcvt.s32.f32 %v671
        %v697 = vcvt.s32.f32 %v672
        %v698 = vcvt.s32.f32 %v673
        %v699 = vcvt.s32.f32 %v674
        %v700 = vcvt.s32.f32 %v675
        %v701 = vcvt.s32.f32 %v676
        %v702 = vcvt.s32.f32 %v677
        %v703 = vcvt.s32.f32 %v678
        %v704 = vcvt.s32.f32 %v679
        %v705 = vcvt.s32.f32 %v680
        %v706 = vcvt.s32.f32 %v681
        %v707 = vcvt.s32.f32 %v682
        %v708 = vcvt.s32.f32 %v683
        %v709 = vcvt.s32.f32 %v684
        %v710 = vcvt.s32.f32 %v685
        %v711 = vcvt.s32.f32 %v686
        %v712 = vcvt.s32.f32 %v687
        %s713 = sadd.s32 %s272, 4
        %s714 = sld [smem:[#allocation3 + %s713]]
        %s715 = sadd.s32 %s272, 5
        %s716 = sld [smem:[#allocation3 + %s715]]
        %s717 = ssub.s32 %s714, 15
        %s718 = ssub.s32 %s716, 15
        %v719 = vstv %s718
        %vm720 = vcmp.eq.s32.totalorder %v216, %v719
        %vm721 = vcmp.eq.s32.totalorder %v217, %v719
        %vm722 = vcmp.eq.s32.totalorder %v218, %v719
        %vm723 = vcmp.eq.s32.totalorder %v219, %v719
        %vm724 = vcmp.eq.s32.totalorder %v220, %v719
        %vm725 = vcmp.eq.s32.totalorder %v221, %v719
        %vm726 = vcmp.eq.s32.totalorder %v222, %v719
        %vm727 = vcmp.eq.s32.totalorder %v223, %v719
        %v728 = vsel %vm720, 1, 0
        %v729 = vsel %vm721, 1, 0
        %v730 = vsel %vm722, 1, 0
        %v731 = vsel %vm723, 1, 0
        %v732 = vsel %vm724, 1, 0
        %v733 = vsel %vm725, 1, 0
        %v734 = vsel %vm726, 1, 0
        %v735 = vsel %vm727, 1, 0
        %v736 = vcvt.s32.f32 %v728
        %v737 = vcvt.s32.f32 %v729
        %v738 = vcvt.s32.f32 %v730
        %v739 = vcvt.s32.f32 %v731
        %v740 = vcvt.s32.f32 %v732
        %v741 = vcvt.s32.f32 %v733
        %v742 = vcvt.s32.f32 %v734
        %v743 = vcvt.s32.f32 %v735
        %s744 = scalar_lea.vmem %s151, 64
        %v745 = vld [vmem:[%s744] sm:$0xff]
        %v746 = vld [vmem:[%s744 + $0x8] sm:$0xff]
        %v747 = vld [vmem:[%s744 + $0x10] sm:$0xff]
        %v748 = vld [vmem:[%s744 + $0x18] sm:$0x7f]
        %v749 = vsel %vm307, %v748, 0.0
        %v751 = vsel %vm309, %v745, 0
        %v754 = vsel %vm309, %v746, 0
        %v757 = vsel %vm309, %v747, 0
        %v760 = vsel %vm309, %v749, 0
        %v763 = vsel %vm307, %v742, 0
        %v766 = vsel %vm307, %v743, 0
        %768 = vmatprep.subr.mxu0 %v737
        %769 = vmatpush1.msra.mxu0 %v736
        %770 = vmatprep.subr.mxu0 %v739
        %771 = vmatpush1.msra.mxu0 %v738
        %772 = vmatprep.subr.mxu0 %v741
        %773 = vmatpush1.msra.mxu0 %v740
        %774 = vmatprep.subr.mxu0 %v766
        %775 = vmatpush1.msra.mxu0 %v763
        %776 = vmatprep.subr.mxu0 0.0
        %777 = vmatpush1.msra.mxu0 0.0
        %778 = vmatprep.subr.mxu0 0.0
        %779 = vmatpush1.msra.mxu0 0.0
        %780 = vmatprep.subr.mxu0 0.0
        %781 = vmatpush1.msra.mxu0 0.0
        %782 = vmatprep.subr.mxu0 0.0
        %783 = vmatpush1.msra.mxu0 0.0
        %784 = vmatprep.subr.mxu0 0.0
        %785 = vmatpush1.msra.mxu0 0.0
        %786 = vmatprep.subr.mxu0 0.0
        %787 = vmatpush1.msra.mxu0 0.0
        %788 = vmatprep.subr.mxu0 0.0
        %789 = vmatpush1.msra.mxu0 0.0
        %790 = vmatprep.subr.mxu0 0.0
        %791 = vmatpush1.msra.mxu0 0.0
        %792 = vmatprep.subr.mxu0 0.0
        %793 = vmatpush1.msra.mxu0 0.0
        %794 = vmatprep.subr.mxu0 0.0
        %795 = vmatpush1.msra.mxu0 0.0
        %796 = vmatprep.subr.mxu0 0.0
        %797 = vmatpush1.msra.mxu0 0.0
        %798 = vmatprep.subr.mxu0 0.0
        %799 = vmatpush1.msra.mxu0 0.0
        %800 = vmatprep.subr.mxu0 0.0
        %801 = vmatpush1.msra.mxu0 0.0
        %802 = vmatprep.subr.mxu0 0.0
        %803 = vmatpush1.msra.mxu0 0.0
        %804 = vmatprep.subr.mxu0 0.0
        %805 = vmatpush1.msra.mxu0 0.0
        %806 = vmatprep.subr.mxu0 0.0
        %807 = vmatpush1.msra.mxu0 0.0
        %808 = vmatprep.subr.mxu0 0.0
        %809 = vmatpush1.msra.mxu0 0.0
        %810 = vmatprep.subr.mxu0 0.0
        %811 = vmatpush1.msra.mxu0 0.0
        %812 = vmatprep.subr.mxu0 0.0
        %813 = vmatpush1.msra.mxu0 0.0
        %814 = vmatprep.subr.mxu0 0.0
        %815 = vmatpush1.msra.mxu0 0.0
        %816 = vmatprep.subr.mxu0 0.0
        %817 = vmatpush1.msra.mxu0 0.0
        %818 = vmatprep.subr.mxu0 0.0
        %819 = vmatpush1.msra.mxu0 0.0
        %820 = vmatprep.subr.mxu0 0.0
        %821 = vmatpush1.msra.mxu0 0.0
        %822 = vmatprep.subr.mxu0 0.0
        %823 = vmatpush1.msra.mxu0 0.0
        %824 = vmatprep.subr.mxu0 0.0
        %825 = vmatpush1.msra.mxu0 0.0
        %826 = vmatprep.subr.mxu0 0.0
        %827 = vmatpush1.msra.mxu0 0.0
        %828 = vmatprep.subr.mxu0 0.0
        %829 = vmatpush1.msra.mxu0 0.0
        %830 = vmatprep.subr.mxu0 0.0
        %831 = vmatpush1.msra.mxu0 0.0
        %832 = vmatprep.mubr.f32.mxu0 0.0
        %833 = vmatmul.mubr.f32.gmra.mrb[0].mxu0 %v751
        %v834 = vpop.f32.mrb[0].mxu0
        %v835 = vadd.f32 0.0, %v834
        %v836 = vpop.f32.mrb[0].mxu0
        %v837 = vadd.f32 0.0, %v836
        %838 = vmatprep.mubr.f32.mxu0 0.0
        %839 = vmatmul.mubr.f32.gmra.mrb[0].mxu0 %v754
        %v840 = vpop.f32.mrb[0].mxu0
        %v841 = vadd.f32 0.0, %v840
        %v842 = vpop.f32.mrb[0].mxu0
        %v843 = vadd.f32 0.0, %v842
        %844 = vmatprep.mubr.f32.mxu0 0.0
        %845 = vmatmul.mubr.f32.gmra.mrb[0].mxu0 %v757
        %v846 = vpop.f32.mrb[0].mxu0
        %v847 = vadd.f32 0.0, %v846
        %v848 = vpop.f32.mrb[0].mxu0
        %v849 = vadd.f32 0.0, %v848
        %850 = vmatprep.mubr.f32.mxu0 0.0
        %851 = vmatmul.mubr.f32.gmra.mrb[0].mxu0 %v760
        %v852 = vpop.f32.mrb[0].mxu0
        %v853 = vadd.f32 0.0, %v852
        %v854 = vpop.f32.mrb[0].mxu0
        %v855 = vadd.f32 0.0, %v854
        %856 = vdwg.mxu0
        %v857 = vstv %s717
        %vm858 = vcmp.eq.s32.totalorder %v245, %v857
        %vm859 = vcmp.eq.s32.totalorder %v246, %v857
        %vm860 = vcmp.eq.s32.totalorder %v247, %v857
        %vm861 = vcmp.eq.s32.totalorder %v248, %v857
        %vm862 = vcmp.eq.s32.totalorder %v249, %v857
        %vm863 = vcmp.eq.s32.totalorder %v250, %v857
        %vm864 = vcmp.eq.s32.totalorder %v251, %v857
        %vm865 = vcmp.eq.s32.totalorder %v252, %v857
        %vm866 = vcmp.eq.s32.totalorder %v253, %v857
        %vm867 = vcmp.eq.s32.totalorder %v254, %v857
        %vm868 = vcmp.eq.s32.totalorder %v255, %v857
        %vm869 = vcmp.eq.s32.totalorder %v256, %v857
        %vm870 = vcmp.eq.s32.totalorder %v257, %v857
        %vm871 = vcmp.eq.s32.totalorder %v258, %v857
        %vm872 = vcmp.eq.s32.totalorder %v259, %v857
        %vm873 = vcmp.eq.s32.totalorder %v260, %v857
        %vm874 = vcmp.eq.s32.totalorder %v261, %v857
        %vm875 = vcmp.eq.s32.totalorder %v262, %v857
        %vm876 = vcmp.eq.s32.totalorder %v263, %v857
        %vm877 = vcmp.eq.s32.totalorder %v264, %v857
        %vm878 = vcmp.eq.s32.totalorder %v265, %v857
        %vm879 = vcmp.eq.s32.totalorder %v266, %v857
        %vm880 = vcmp.eq.s32.totalorder %v267, %v857
        %vm881 = vcmp.eq.s32.totalorder %v268, %v857
        %vm882 = vcmp.eq.s32.totalorder %v269, %v857
        %v883 = vsel %vm858, 1, 0
        %v884 = vsel %vm859, 1, 0
        %v885 = vsel %vm860, 1, 0
        %v886 = vsel %vm861, 1, 0
        %v887 = vsel %vm862, 1, 0
        %v888 = vsel %vm863, 1, 0
        %v889 = vsel %vm864, 1, 0
        %v890 = vsel %vm865, 1, 0
        %v891 = vsel %vm866, 1, 0
        %v892 = vsel %vm867, 1, 0
        %v893 = vsel %vm868, 1, 0
        %v894 = vsel %vm869, 1, 0
        %v895 = vsel %vm870, 1, 0
        %v896 = vsel %vm871, 1, 0
        %v897 = vsel %vm872, 1, 0
        %v898 = vsel %vm873, 1, 0
        %v899 = vsel %vm874, 1, 0
        %v900 = vsel %vm875, 1, 0
        %v901 = vsel %vm876, 1, 0
        %v902 = vsel %vm877, 1, 0
        %v903 = vsel %vm878, 1, 0
        %v904 = vsel %vm879, 1, 0
        %v905 = vsel %vm880, 1, 0
        %v906 = vsel %vm881, 1, 0
        %v907 = vsel %vm882, 1, 0
        %v908 = vcvt.s32.f32 %v883
        %v909 = vcvt.s32.f32 %v884
        %v910 = vcvt.s32.f32 %v885
        %v911 = vcvt.s32.f32 %v886
        %v912 = vcvt.s32.f32 %v887
        %v913 = vcvt.s32.f32 %v888
        %v914 = vcvt.s32.f32 %v889
        %v915 = vcvt.s32.f32 %v890
        %v916 = vcvt.s32.f32 %v891
        %v917 = vcvt.s32.f32 %v892
        %v918 = vcvt.s32.f32 %v893
        %v919 = vcvt.s32.f32 %v894
        %v920 = vcvt.s32.f32 %v895
        %v921 = vcvt.s32.f32 %v896
        %v922 = vcvt.s32.f32 %v897
        %v923 = vcvt.s32.f32 %v898
        %v924 = vcvt.s32.f32 %v899
        %v925 = vcvt.s32.f32 %v900
        %v926 = vcvt.s32.f32 %v901
        %v927 = vcvt.s32.f32 %v902
        %v928 = vcvt.s32.f32 %v903
        %v929 = vcvt.s32.f32 %v904
        %v930 = vcvt.s32.f32 %v905
        %v931 = vcvt.s32.f32 %v906
        %v932 = vcvt.s32.f32 %v907
        %s933 = sadd.s32 %s272, 6
        %s934 = sld [smem:[#allocation3 + %s933]]
        %s935 = sadd.s32 %s272, 7
        %s936 = sld [smem:[#allocation3 + %s935]]
        %s937 = ssub.s32 %s934, 15
        %s938 = ssub.s32 %s936, 15
        %v939 = vstv %s938
        %vm940 = vcmp.eq.s32.totalorder %v216, %v939
        %vm941 = vcmp.eq.s32.totalorder %v217, %v939
        %vm942 = vcmp.eq.s32.totalorder %v218, %v939
        %vm943 = vcmp.eq.s32.totalorder %v219, %v939
        %vm944 = vcmp.eq.s32.totalorder %v220, %v939
        %vm945 = vcmp.eq.s32.totalorder %v221, %v939
        %vm946 = vcmp.eq.s32.totalorder %v222, %v939
        %vm947 = vcmp.eq.s32.totalorder %v223, %v939
        %v948 = vsel %vm940, 1, 0
        %v949 = vsel %vm941, 1, 0
        %v950 = vsel %vm942, 1, 0
        %v951 = vsel %vm943, 1, 0
        %v952 = vsel %vm944, 1, 0
        %v953 = vsel %vm945, 1, 0
        %v954 = vsel %vm946, 1, 0
        %v955 = vsel %vm947, 1, 0
        %v956 = vcvt.s32.f32 %v948
        %v957 = vcvt.s32.f32 %v949
        %v958 = vcvt.s32.f32 %v950
        %v959 = vcvt.s32.f32 %v951
        %v960 = vcvt.s32.f32 %v952
        %v961 = vcvt.s32.f32 %v953
        %v962 = vcvt.s32.f32 %v954
        %v963 = vcvt.s32.f32 %v955
        %s964 = scalar_lea.vmem %s151, 96
        %v965 = vld [vmem:[%s964] sm:$0xff]
        %v966 = vld [vmem:[%s964 + $0x8] sm:$0xff]
        %v967 = vld [vmem:[%s964 + $0x10] sm:$0xff]
        %v968 = vld [vmem:[%s964 + $0x18] sm:$0x7f]
        %v969 = vsel %vm307, %v968, 0.0
        %v971 = vsel %vm309, %v965, 0
        %v974 = vsel %vm309, %v966, 0
        %v977 = vsel %vm309, %v967, 0
        %v980 = vsel %vm309, %v969, 0
        %v983 = vsel %vm307, %v962, 0
        %v986 = vsel %vm307, %v963, 0
        %988 = vmatprep.subr.mxu0 %v957
        %989 = vmatpush1.msra.mxu0 %v956
        %990 = vmatprep.subr.mxu0 %v959
        %991 = vmatpush1.msra.mxu0 %v958
        %992 = vmatprep.subr.mxu0 %v961
        %993 = vmatpush1.msra.mxu0 %v960
        %994 = vmatprep.subr.mxu0 %v986
        %995 = vmatpush1.msra.mxu0 %v983
        %996 = vmatprep.subr.mxu0 0.0
        %997 = vmatpush1.msra.mxu0 0.0
        %998 = vmatprep.subr.mxu0 0.0
        %999 = vmatpush1.msra.mxu0 0.0
        %1000 = vmatprep.subr.mxu0 0.0
        %1001 = vmatpush1.msra.mxu0 0.0
        %1002 = vmatprep.subr.mxu0 0.0
        %1003 = vmatpush1.msra.mxu0 0.0
        %1004 = vmatprep.subr.mxu0 0.0
        %1005 = vmatpush1.msra.mxu0 0.0
        %1006 = vmatprep.subr.mxu0 0.0
        %1007 = vmatpush1.msra.mxu0 0.0
        %1008 = vmatprep.subr.mxu0 0.0
        %1009 = vmatpush1.msra.mxu0 0.0
        %1010 = vmatprep.subr.mxu0 0.0
        %1011 = vmatpush1.msra.mxu0 0.0
        %1012 = vmatprep.subr.mxu0 0.0
        %1013 = vmatpush1.msra.mxu0 0.0
        %1014 = vmatprep.subr.mxu0 0.0
        %1015 = vmatpush1.msra.mxu0 0.0
        %1016 = vmatprep.subr.mxu0 0.0
        %1017 = vmatpush1.msra.mxu0 0.0
        %1018 = vmatprep.subr.mxu0 0.0
        %1019 = vmatpush1.msra.mxu0 0.0
        %1020 = vmatprep.subr.mxu0 0.0
        %1021 = vmatpush1.msra.mxu0 0.0
        %1022 = vmatprep.subr.mxu0 0.0
        %1023 = vmatpush1.msra.mxu0 0.0
        %1024 = vmatprep.subr.mxu0 0.0
        %1025 = vmatpush1.msra.mxu0 0.0
        %1026 = vmatprep.subr.mxu0 0.0
        %1027 = vmatpush1.msra.mxu0 0.0
        %1028 = vmatprep.subr.mxu0 0.0
        %1029 = vmatpush1.msra.mxu0 0.0
        %1030 = vmatprep.subr.mxu0 0.0
        %1031 = vmatpush1.msra.mxu0 0.0
        %1032 = vmatprep.subr.mxu0 0.0
        %1033 = vmatpush1.msra.mxu0 0.0
        %1034 = vmatprep.subr.mxu0 0.0
        %1035 = vmatpush1.msra.mxu0 0.0
        %1036 = vmatprep.subr.mxu0 0.0
        %1037 = vmatpush1.msra.mxu0 0.0
        %1038 = vmatprep.subr.mxu0 0.0
        %1039 = vmatpush1.msra.mxu0 0.0
        %1040 = vmatprep.subr.mxu0 0.0
        %1041 = vmatpush1.msra.mxu0 0.0
        %1042 = vmatprep.subr.mxu0 0.0
        %1043 = vmatpush1.msra.mxu0 0.0
        %1044 = vmatprep.subr.mxu0 0.0
        %1045 = vmatpush1.msra.mxu0 0.0
        %1046 = vmatprep.subr.mxu0 0.0
        %1047 = vmatpush1.msra.mxu0 0.0
        %1048 = vmatprep.subr.mxu0 0.0
        %1049 = vmatpush1.msra.mxu0 0.0
        %1050 = vmatprep.subr.mxu0 0.0
        %1051 = vmatpush1.msra.mxu0 0.0
        %1052 = vmatprep.mubr.f32.mxu0 0.0
        %1053 = vmatmul.mubr.f32.gmra.mrb[0].mxu0 %v971
        %v1054 = vpop.f32.mrb[0].mxu0
        %v1055 = vadd.f32 0.0, %v1054
        %v1056 = vpop.f32.mrb[0].mxu0
        %v1057 = vadd.f32 0.0, %v1056
        %1058 = vmatprep.mubr.f32.mxu0 0.0
        %1059 = vmatmul.mubr.f32.gmra.mrb[0].mxu0 %v974
        %v1060 = vpop.f32.mrb[0].mxu0
        %v1061 = vadd.f32 0.0, %v1060
        %v1062 = vpop.f32.mrb[0].mxu0
        %v1063 = vadd.f32 0.0, %v1062
        %1064 = vmatprep.mubr.f32.mxu0 0.0
        %1065 = vmatmul.mubr.f32.gmra.mrb[0].mxu0 %v977
        %v1066 = vpop.f32.mrb[0].mxu0
        %v1067 = vadd.f32 0.0, %v1066
        %v1068 = vpop.f32.mrb[0].mxu0
        %v1069 = vadd.f32 0.0, %v1068
        %1070 = vmatprep.mubr.f32.mxu0 0.0
        %1071 = vmatmul.mubr.f32.gmra.mrb[0].mxu0 %v980
        %v1072 = vpop.f32.mrb[0].mxu0
        %v1073 = vadd.f32 0.0, %v1072
        %v1074 = vpop.f32.mrb[0].mxu0
        %v1075 = vadd.f32 0.0, %v1074
        %1076 = vdwg.mxu0
        %v1077 = vstv %s937
        %vm1078 = vcmp.eq.s32.totalorder %v245, %v1077
        %vm1079 = vcmp.eq.s32.totalorder %v246, %v1077
        %vm1080 = vcmp.eq.s32.totalorder %v247, %v1077
        %vm1081 = vcmp.eq.s32.totalorder %v248, %v1077
        %vm1082 = vcmp.eq.s32.totalorder %v249, %v1077
        %vm1083 = vcmp.eq.s32.totalorder %v250, %v1077
        %vm1084 = vcmp.eq.s32.totalorder %v251, %v1077
        %vm1085 = vcmp.eq.s32.totalorder %v252, %v1077
        %vm1086 = vcmp.eq.s32.totalorder %v253, %v1077
        %vm1087 = vcmp.eq.s32.totalorder %v254, %v1077
        %vm1088 = vcmp.eq.s32.totalorder %v255, %v1077
        %vm1089 = vcmp.eq.s32.totalorder %v256, %v1077
        %vm1090 = vcmp.eq.s32.totalorder %v257, %v1077
        %vm1091 = vcmp.eq.s32.totalorder %v258, %v1077
        %vm1092 = vcmp.eq.s32.totalorder %v259, %v1077
        %vm1093 = vcmp.eq.s32.totalorder %v260, %v1077
        %vm1094 = vcmp.eq.s32.totalorder %v261, %v1077
        %vm1095 = vcmp.eq.s32.totalorder %v262, %v1077
        %vm1096 = vcmp.eq.s32.totalorder %v263, %v1077
        %vm1097 = vcmp.eq.s32.totalorder %v264, %v1077
        %vm1098 = vcmp.eq.s32.totalorder %v265, %v1077
        %vm1099 = vcmp.eq.s32.totalorder %v266, %v1077
        %vm1100 = vcmp.eq.s32.totalorder %v267, %v1077
        %vm1101 = vcmp.eq.s32.totalorder %v268, %v1077
        %vm1102 = vcmp.eq.s32.totalorder %v269, %v1077
        %v1103 = vsel %vm1078, 1, 0
        %v1104 = vsel %vm1079, 1, 0
        %v1105 = vsel %vm1080, 1, 0
        %v1106 = vsel %vm1081, 1, 0
        %v1107 = vsel %vm1082, 1, 0
        %v1108 = vsel %vm1083, 1, 0
        %v1109 = vsel %vm1084, 1, 0
        %v1110 = vsel %vm1085, 1, 0
        %v1111 = vsel %vm1086, 1, 0
        %v1112 = vsel %vm1087, 1, 0
        %v1113 = vsel %vm1088, 1, 0
        %v1114 = vsel %vm1089, 1, 0
        %v1115 = vsel %vm1090, 1, 0
        %v1116 = vsel %vm1091, 1, 0
        %v1117 = vsel %vm1092, 1, 0
        %v1118 = vsel %vm1093, 1, 0
        %v1119 = vsel %vm1094, 1, 0
        %v1120 = vsel %vm1095, 1, 0
        %v1121 = vsel %vm1096, 1, 0
        %v1122 = vsel %vm1097, 1, 0
        %v1123 = vsel %vm1098, 1, 0
        %v1124 = vsel %vm1099, 1, 0
        %v1125 = vsel %vm1100, 1, 0
        %v1126 = vsel %vm1101, 1, 0
        %v1127 = vsel %vm1102, 1, 0
        %v1128 = vcvt.s32.f32 %v1103
        %v1129 = vcvt.s32.f32 %v1104
        %v1130 = vcvt.s32.f32 %v1105
        %v1131 = vcvt.s32.f32 %v1106
        %v1132 = vcvt.s32.f32 %v1107
        %v1133 = vcvt.s32.f32 %v1108
        %v1134 = vcvt.s32.f32 %v1109
        %v1135 = vcvt.s32.f32 %v1110
        %v1136 = vcvt.s32.f32 %v1111
        %v1137 = vcvt.s32.f32 %v1112
        %v1138 = vcvt.s32.f32 %v1113
        %v1139 = vcvt.s32.f32 %v1114
        %v1140 = vcvt.s32.f32 %v1115
        %v1141 = vcvt.s32.f32 %v1116
        %v1142 = vcvt.s32.f32 %v1117
        %v1143 = vcvt.s32.f32 %v1118
        %v1144 = vcvt.s32.f32 %v1119
        %v1145 = vcvt.s32.f32 %v1120
        %v1146 = vcvt.s32.f32 %v1121
        %v1147 = vcvt.s32.f32 %v1122
        %v1148 = vcvt.s32.f32 %v1123
        %v1149 = vcvt.s32.f32 %v1124
        %v1150 = vcvt.s32.f32 %v1125
        %v1151 = vcvt.s32.f32 %v1126
        %v1152 = vcvt.s32.f32 %v1127
        %1178 = vrot.lane.b32.xlu0 %v688, 32
        %v1179 = vpop.permute.xlu0 %1178
        %1180 = vrot.lane.b32.xlu0 %v689, 32
        %v1181 = vpop.permute.xlu0 %1180
        %1182 = vrot.lane.b32.xlu0 %v690, 32
        %v1183 = vpop.permute.xlu0 %1182
        %1184 = vrot.lane.b32.xlu0 %v691, 32
        %v1185 = vpop.permute.xlu0 %1184
        %1186 = vrot.lane.b32.xlu0 %v692, 32
        %v1187 = vpop.permute.xlu0 %1186
        %1188 = vrot.lane.b32.xlu0 %v693, 32
        %v1189 = vpop.permute.xlu0 %1188
        %1190 = vrot.lane.b32.xlu0 %v694, 32
        %v1191 = vpop.permute.xlu0 %1190
        %1192 = vrot.lane.b32.xlu0 %v695, 32
        %v1193 = vpop.permute.xlu0 %1192
        %1194 = vrot.lane.b32.xlu0 %v696, 32
        %v1195 = vpop.permute.xlu0 %1194
        %1196 = vrot.lane.b32.xlu0 %v697, 32
        %v1197 = vpop.permute.xlu0 %1196
        %1198 = vrot.lane.b32.xlu0 %v698, 32
        %v1199 = vpop.permute.xlu0 %1198
        %1200 = vrot.lane.b32.xlu0 %v699, 32
        %v1201 = vpop.permute.xlu0 %1200
        %1202 = vrot.lane.b32.xlu0 %v700, 32
        %v1203 = vpop.permute.xlu0 %1202
        %1204 = vrot.lane.b32.xlu0 %v701, 32
        %v1205 = vpop.permute.xlu0 %1204
        %1206 = vrot.lane.b32.xlu0 %v702, 32
        %v1207 = vpop.permute.xlu0 %1206
        %1208 = vrot.lane.b32.xlu0 %v703, 32
        %v1209 = vpop.permute.xlu0 %1208
        %1210 = vrot.lane.b32.xlu0 %v704, 32
        %v1211 = vpop.permute.xlu0 %1210
        %1212 = vrot.lane.b32.xlu0 %v705, 32
        %v1213 = vpop.permute.xlu0 %1212
        %1214 = vrot.lane.b32.xlu0 %v706, 32
        %v1215 = vpop.permute.xlu0 %1214
        %1216 = vrot.lane.b32.xlu0 %v707, 32
        %v1217 = vpop.permute.xlu0 %1216
        %1218 = vrot.lane.b32.xlu0 %v708, 32
        %v1219 = vpop.permute.xlu0 %1218
        %1220 = vrot.lane.b32.xlu0 %v709, 32
        %v1221 = vpop.permute.xlu0 %1220
        %1222 = vrot.lane.b32.xlu0 %v710, 32
        %v1223 = vpop.permute.xlu0 %1222
        %1224 = vrot.lane.b32.xlu0 %v711, 32
        %v1225 = vpop.permute.xlu0 %1224
        %1226 = vrot.lane.b32.xlu0 %v712, 32
        %v1227 = vpop.permute.xlu0 %1226
        %1278 = vrot.lane.b32.xlu0 %v908, 64
        %v1279 = vpop.permute.xlu0 %1278
        %1280 = vrot.lane.b32.xlu0 %v909, 64
        %v1281 = vpop.permute.xlu0 %1280
        %1282 = vrot.lane.b32.xlu0 %v910, 64
        %v1283 = vpop.permute.xlu0 %1282
        %1284 = vrot.lane.b32.xlu0 %v911, 64
        %v1285 = vpop.permute.xlu0 %1284
        %1286 = vrot.lane.b32.xlu0 %v912, 64
        %v1287 = vpop.permute.xlu0 %1286
        %1288 = vrot.lane.b32.xlu0 %v913, 64
        %v1289 = vpop.permute.xlu0 %1288
        %1290 = vrot.lane.b32.xlu0 %v914, 64
        %v1291 = vpop.permute.xlu0 %1290
        %1292 = vrot.lane.b32.xlu0 %v915, 64
        %v1293 = vpop.permute.xlu0 %1292
        %1294 = vrot.lane.b32.xlu0 %v916, 64
        %v1295 = vpop.permute.xlu0 %1294
        %1296 = vrot.lane.b32.xlu0 %v917, 64
        %v1297 = vpop.permute.xlu0 %1296
        %1298 = vrot.lane.b32.xlu0 %v918, 64
        %v1299 = vpop.permute.xlu0 %1298
        %1300 = vrot.lane.b32.xlu0 %v919, 64
        %v1301 = vpop.permute.xlu0 %1300
        %1302 = vrot.lane.b32.xlu0 %v920, 64
        %v1303 = vpop.permute.xlu0 %1302
        %1304 = vrot.lane.b32.xlu0 %v921, 64
        %v1305 = vpop.permute.xlu0 %1304
        %1306 = vrot.lane.b32.xlu0 %v922, 64
        %v1307 = vpop.permute.xlu0 %1306
        %1308 = vrot.lane.b32.xlu0 %v923, 64
        %v1309 = vpop.permute.xlu0 %1308
        %1310 = vrot.lane.b32.xlu0 %v924, 64
        %v1311 = vpop.permute.xlu0 %1310
        %1312 = vrot.lane.b32.xlu0 %v925, 64
        %v1313 = vpop.permute.xlu0 %1312
        %1314 = vrot.lane.b32.xlu0 %v926, 64
        %v1315 = vpop.permute.xlu0 %1314
        %1316 = vrot.lane.b32.xlu0 %v927, 64
        %v1317 = vpop.permute.xlu0 %1316
        %1318 = vrot.lane.b32.xlu0 %v928, 64
        %v1319 = vpop.permute.xlu0 %1318
        %1320 = vrot.lane.b32.xlu0 %v929, 64
        %v1321 = vpop.permute.xlu0 %1320
        %1322 = vrot.lane.b32.xlu0 %v930, 64
        %v1323 = vpop.permute.xlu0 %1322
        %1324 = vrot.lane.b32.xlu0 %v931, 64
        %v1325 = vpop.permute.xlu0 %1324
        %1326 = vrot.lane.b32.xlu0 %v932, 64
        %v1327 = vpop.permute.xlu0 %1326
        %1378 = vrot.lane.b32.xlu0 %v1128, 96
        %v1379 = vpop.permute.xlu0 %1378
        %1380 = vrot.lane.b32.xlu0 %v1129, 96
        %v1381 = vpop.permute.xlu0 %1380
        %1382 = vrot.lane.b32.xlu0 %v1130, 96
        %v1383 = vpop.permute.xlu0 %1382
        %1384 = vrot.lane.b32.xlu0 %v1131, 96
        %v1385 = vpop.permute.xlu0 %1384
        %1386 = vrot.lane.b32.xlu0 %v1132, 96
        %v1387 = vpop.permute.xlu0 %1386
        %1388 = vrot.lane.b32.xlu0 %v1133, 96
        %v1389 = vpop.permute.xlu0 %1388
        %1390 = vrot.lane.b32.xlu0 %v1134, 96
        %v1391 = vpop.permute.xlu0 %1390
        %1392 = vrot.lane.b32.xlu0 %v1135, 96
        %v1393 = vpop.permute.xlu0 %1392
        %1394 = vrot.lane.b32.xlu0 %v1136, 96
        %v1395 = vpop.permute.xlu0 %1394
        %1396 = vrot.lane.b32.xlu0 %v1137, 96
        %v1397 = vpop.permute.xlu0 %1396
        %1398 = vrot.lane.b32.xlu0 %v1138, 96
        %v1399 = vpop.permute.xlu0 %1398
        %1400 = vrot.lane.b32.xlu0 %v1139, 96
        %v1401 = vpop.permute.xlu0 %1400
        %1402 = vrot.lane.b32.xlu0 %v1140, 96
        %v1403 = vpop.permute.xlu0 %1402
        %1404 = vrot.lane.b32.xlu0 %v1141, 96
        %v1405 = vpop.permute.xlu0 %1404
        %1406 = vrot.lane.b32.xlu0 %v1142, 96
        %v1407 = vpop.permute.xlu0 %1406
        %1408 = vrot.lane.b32.xlu0 %v1143, 96
        %v1409 = vpop.permute.xlu0 %1408
        %1410 = vrot.lane.b32.xlu0 %v1144, 96
        %v1411 = vpop.permute.xlu0 %1410
        %1412 = vrot.lane.b32.xlu0 %v1145, 96
        %v1413 = vpop.permute.xlu0 %1412
        %1414 = vrot.lane.b32.xlu0 %v1146, 96
        %v1415 = vpop.permute.xlu0 %1414
        %1416 = vrot.lane.b32.xlu0 %v1147, 96
        %v1417 = vpop.permute.xlu0 %1416
        %1418 = vrot.lane.b32.xlu0 %v1148, 96
        %v1419 = vpop.permute.xlu0 %1418
        %1420 = vrot.lane.b32.xlu0 %v1149, 96
        %v1421 = vpop.permute.xlu0 %1420
        %1422 = vrot.lane.b32.xlu0 %v1150, 96
        %v1423 = vpop.permute.xlu0 %1422
        %1424 = vrot.lane.b32.xlu0 %v1151, 96
        %v1425 = vpop.permute.xlu0 %1424
        %1426 = vrot.lane.b32.xlu0 %v1152, 96
        %v1427 = vpop.permute.xlu0 %1426
        %vm1453 = vcmask 261120
        %v1454 = vsel %vm1453, %v468, %v1179
        %v1455 = vsel %vm1453, %v469, %v1181
        %v1456 = vsel %vm1453, %v470, %v1183
        %v1457 = vsel %vm1453, %v471, %v1185
        %v1458 = vsel %vm1453, %v472, %v1187
        %v1459 = vsel %vm1453, %v473, %v1189
        %v1460 = vsel %vm1453, %v474, %v1191
        %v1461 = vsel %vm1453, %v475, %v1193
        %v1462 = vsel %vm1453, %v476, %v1195
        %v1463 = vsel %vm1453, %v477, %v1197
        %v1464 = vsel %vm1453, %v478, %v1199
        %v1465 = vsel %vm1453, %v479, %v1201
        %v1466 = vsel %vm1453, %v480, %v1203
        %v1467 = vsel %vm1453, %v481, %v1205
        %v1468 = vsel %vm1453, %v482, %v1207
        %v1469 = vsel %vm1453, %v483, %v1209
        %v1470 = vsel %vm1453, %v484, %v1211
        %v1471 = vsel %vm1453, %v485, %v1213
        %v1472 = vsel %vm1453, %v486, %v1215
        %v1473 = vsel %vm1453, %v487, %v1217
        %v1474 = vsel %vm1453, %v488, %v1219
        %v1475 = vsel %vm1453, %v489, %v1221
        %v1476 = vsel %vm1453, %v490, %v1223
        %v1477 = vsel %vm1453, %v491, %v1225
        %v1478 = vsel %vm1453, %v492, %v1227
        %vm1479 = vcmask 523264
        %v1480 = vsel %vm1479, %v1454, %v1279
        %v1481 = vsel %vm1479, %v1455, %v1281
        %v1482 = vsel %vm1479, %v1456, %v1283
        %v1483 = vsel %vm1479, %v1457, %v1285
        %v1484 = vsel %vm1479, %v1458, %v1287
        %v1485 = vsel %vm1479, %v1459, %v1289
        %v1486 = vsel %vm1479, %v1460, %v1291
        %v1487 = vsel %vm1479, %v1461, %v1293
        %v1488 = vsel %vm1479, %v1462, %v1295
        %v1489 = vsel %vm1479, %v1463, %v1297
        %v1490 = vsel %vm1479, %v1464, %v1299
        %v1491 = vsel %vm1479, %v1465, %v1301
        %v1492 = vsel %vm1479, %v1466, %v1303
        %v1493 = vsel %vm1479, %v1467, %v1305
        %v1494 = vsel %vm1479, %v1468, %v1307
        %v1495 = vsel %vm1479, %v1469, %v1309
        %v1496 = vsel %vm1479, %v1470, %v1311
        %v1497 = vsel %vm1479, %v1471, %v1313
        %v1498 = vsel %vm1479, %v1472, %v1315
        %v1499 = vsel %vm1479, %v1473, %v1317
        %v1500 = vsel %vm1479, %v1474, %v1319
        %v1501 = vsel %vm1479, %v1475, %v1321
        %v1502 = vsel %vm1479, %v1476, %v1323
        %v1503 = vsel %vm1479, %v1477, %v1325
        %v1504 = vsel %vm1479, %v1478, %v1327
        %vm1505 = vcmask 785408
        %v1506 = vsel %vm1505, %v1480, %v1379
        %v1507 = vsel %vm1505, %v1481, %v1381
        %v1508 = vsel %vm1505, %v1482, %v1383
        %v1509 = vsel %vm1505, %v1483, %v1385
        %v1510 = vsel %vm1505, %v1484, %v1387
        %v1511 = vsel %vm1505, %v1485, %v1389
        %v1512 = vsel %vm1505, %v1486, %v1391
        %v1513 = vsel %vm1505, %v1487, %v1393
        %v1514 = vsel %vm1505, %v1488, %v1395
        %v1515 = vsel %vm1505, %v1489, %v1397
        %v1516 = vsel %vm1505, %v1490, %v1399
        %v1517 = vsel %vm1505, %v1491, %v1401
        %v1518 = vsel %vm1505, %v1492, %v1403
        %v1519 = vsel %vm1505, %v1493, %v1405
        %v1520 = vsel %vm1505, %v1494, %v1407
        %v1521 = vsel %vm1505, %v1495, %v1409
        %v1522 = vsel %vm1505, %v1496, %v1411
        %v1523 = vsel %vm1505, %v1497, %v1413
        %v1524 = vsel %vm1505, %v1498, %v1415
        %v1525 = vsel %vm1505, %v1499, %v1417
        %v1526 = vsel %vm1505, %v1500, %v1419
        %v1527 = vsel %vm1505, %v1501, %v1421
        %v1528 = vsel %vm1505, %v1502, %v1423
        %v1529 = vsel %vm1505, %v1503, %v1425
        %v1530 = vsel %vm1505, %v1504, %v1427
        %v1531 = vld [vmem:[%s141] sm:$0xff]
        %v1532 = vld [vmem:[%s141 + $0x8] sm:$0xff]
        %v1533 = vld [vmem:[%s141 + $0x10] sm:$0xff]
        %v1534 = vld [vmem:[%s141 + $0x18] sm:$0xff]
        %v1535 = vld [vmem:[%s141 + $0x20] sm:$0xff]
        %v1536 = vld [vmem:[%s141 + $0x28] sm:$0xff]
        %v1537 = vld [vmem:[%s141 + $0x30] sm:$0xff]
        %v1538 = vld [vmem:[%s141 + $0x38] sm:$0xff]
        %v1539 = vld [vmem:[%s141 + $0x40] sm:$0xff]
        %v1540 = vld [vmem:[%s141 + $0x48] sm:$0xff]
        %v1541 = vld [vmem:[%s141 + $0x50] sm:$0xff]
        %v1542 = vld [vmem:[%s141 + $0x58] sm:$0xff]
        %v1543 = vld [vmem:[%s141 + $0x60] sm:$0xff]
        %v1544 = vld [vmem:[%s141 + $0x68] sm:$0xff]
        %v1545 = vld [vmem:[%s141 + $0x70] sm:$0xff]
        %v1546 = vld [vmem:[%s141 + $0x78] sm:$0xff]
        %v1547 = vld [vmem:[%s141 + $0x80] sm:$0xff]
        %v1548 = vld [vmem:[%s141 + $0x88] sm:$0xff]
        %v1549 = vld [vmem:[%s141 + $0x90] sm:$0xff]
        %v1550 = vld [vmem:[%s141 + $0x98] sm:$0xff]
        %v1551 = vld [vmem:[%s141 + $0xa0] sm:$0xff]
        %v1552 = vld [vmem:[%s141 + $0xa8] sm:$0xff]
        %v1553 = vld [vmem:[%s141 + $0xb0] sm:$0xff]
        %v1554 = vld [vmem:[%s141 + $0xb8] sm:$0xff]
        %v1555 = vld [vmem:[%s141 + $0xc0] sm:$0xff]
        %v1556 = vld [vmem:[%s141 + $0xc8] sm:$0xff]
        %v1557 = vld [vmem:[%s141 + $0xd0] sm:$0xff]
        %v1558 = vld [vmem:[%s141 + $0xd8] sm:$0xff]
        %v1559 = vld [vmem:[%s141 + $0xe0] sm:$0xff]
        %v1560 = vld [vmem:[%s141 + $0xe8] sm:$0xff]
        %v1561 = vld [vmem:[%s141 + $0xf0] sm:$0xff]
        %v1562 = vld [vmem:[%s141 + $0xf8] sm:$0xff]
        %v1563 = vld [vmem:[%s141 + $0x100] sm:$0xff]
        %v1564 = vld [vmem:[%s141 + $0x108] sm:$0xff]
        %v1565 = vld [vmem:[%s141 + $0x110] sm:$0xff]
        %v1566 = vld [vmem:[%s141 + $0x118] sm:$0xff]
        %v1567 = vld [vmem:[%s141 + $0x120] sm:$0xff]
        %v1568 = vld [vmem:[%s141 + $0x128] sm:$0xff]
        %v1569 = vld [vmem:[%s141 + $0x130] sm:$0xff]
        %v1570 = vld [vmem:[%s141 + $0x138] sm:$0xff]
        %v1571 = vld [vmem:[%s141 + $0x140] sm:$0xff]
        %v1572 = vld [vmem:[%s141 + $0x148] sm:$0xff]
        %v1573 = vld [vmem:[%s141 + $0x150] sm:$0xff]
        %v1574 = vld [vmem:[%s141 + $0x158] sm:$0xff]
        %v1575 = vld [vmem:[%s141 + $0x160] sm:$0xff]
        %v1576 = vld [vmem:[%s141 + $0x168] sm:$0xff]
        %v1577 = vld [vmem:[%s141 + $0x170] sm:$0xff]
        %v1578 = vld [vmem:[%s141 + $0x178] sm:$0xff]
        %v1579 = vld [vmem:[%s141 + $0x180] sm:$0xff]
        %v1580 = vld [vmem:[%s141 + $0x188] sm:$0xff]
        %1581 = vmatprep.subr.mxu0 %v397
        %1582 = vmatpush1.msra.mxu0 %v395
        %1583 = vmatprep.subr.mxu0 %v403
        %1584 = vmatpush1.msra.mxu0 %v401
        %1585 = vmatprep.subr.mxu0 %v409
        %1586 = vmatpush1.msra.mxu0 %v407
        %1587 = vmatprep.subr.mxu0 %v415
        %1588 = vmatpush1.msra.mxu0 %v413
        %1589 = vmatprep.subr.mxu0 %v617
        %1590 = vmatpush1.msra.mxu0 %v615
        %1591 = vmatprep.subr.mxu0 %v623
        %1592 = vmatpush1.msra.mxu0 %v621
        %1593 = vmatprep.subr.mxu0 %v629
        %1594 = vmatpush1.msra.mxu0 %v627
        %1595 = vmatprep.subr.mxu0 %v635
        %1596 = vmatpush1.msra.mxu0 %v633
        %1597 = vmatprep.subr.mxu0 %v837
        %1598 = vmatpush1.msra.mxu0 %v835
        %1599 = vmatprep.subr.mxu0 %v843
        %1600 = vmatpush1.msra.mxu0 %v841
        %1601 = vmatprep.subr.mxu0 %v849
        %1602 = vmatpush1.msra.mxu0 %v847
        %1603 = vmatprep.subr.mxu0 %v855
        %1604 = vmatpush1.msra.mxu0 %v853
        %1605 = vmatprep.subr.mxu0 %v1057
        %1606 = vmatpush1.msra.mxu0 %v1055
        %1607 = vmatprep.subr.mxu0 %v1063
        %1608 = vmatpush1.msra.mxu0 %v1061
        %1609 = vmatprep.subr.mxu0 %v1069
        %1610 = vmatpush1.msra.mxu0 %v1067
        %1611 = vmatprep.subr.mxu0 %v1075
        %1612 = vmatpush1.msra.mxu0 %v1073
        %1613 = vmatprep.subr.mxu0 0.0
        %1614 = vmatpush1.msra.mxu0 0.0
        %1615 = vmatprep.subr.mxu0 0.0
        %1616 = vmatpush1.msra.mxu0 0.0
        %1617 = vmatprep.subr.mxu0 0.0
        %1618 = vmatpush1.msra.mxu0 0.0
        %1619 = vmatprep.subr.mxu0 0.0
        %1620 = vmatpush1.msra.mxu0 0.0
        %1621 = vmatprep.subr.mxu0 0.0
        %1622 = vmatpush1.msra.mxu0 0.0
        %1623 = vmatprep.subr.mxu0 0.0
        %1624 = vmatpush1.msra.mxu0 0.0
        %1625 = vmatprep.subr.mxu0 0.0
        %1626 = vmatpush1.msra.mxu0 0.0
        %1627 = vmatprep.subr.mxu0 0.0
        %1628 = vmatpush1.msra.mxu0 0.0
        %1629 = vmatprep.subr.mxu0 0.0
        %1630 = vmatpush1.msra.mxu0 0.0
        %1631 = vmatprep.subr.mxu0 0.0
        %1632 = vmatpush1.msra.mxu0 0.0
        %1633 = vmatprep.subr.mxu0 0.0
        %1634 = vmatpush1.msra.mxu0 0.0
        %1635 = vmatprep.subr.mxu0 0.0
        %1636 = vmatpush1.msra.mxu0 0.0
        %1637 = vmatprep.subr.mxu0 0.0
        %1638 = vmatpush1.msra.mxu0 0.0
        %1639 = vmatprep.subr.mxu0 0.0
        %1640 = vmatpush1.msra.mxu0 0.0
        %1641 = vmatprep.subr.mxu0 0.0
        %1642 = vmatpush1.msra.mxu0 0.0
        %1643 = vmatprep.subr.mxu0 0.0
        %1644 = vmatpush1.msra.mxu0 0.0
        %1645 = vmatprep.mubr.f32.mxu0 0.0
        %1646 = vmatmul.mubr.f32.gmra.mrb[0].mxu0 %v1506
        %v1647 = vpop.f32.mrb[0].mxu0
        %v1648 = vadd.f32 0.0, %v1647
        %v1649 = vpop.f32.mrb[0].mxu0
        %v1650 = vadd.f32 0.0, %v1649
        %1651 = vmatprep.mubr.f32.mxu0 0.0
        %1652 = vmatmul.mubr.f32.gmra.mrb[0].mxu0 %v1507
        %v1653 = vpop.f32.mrb[0].mxu0
        %v1654 = vadd.f32 0.0, %v1653
        %v1655 = vpop.f32.mrb[0].mxu0
        %v1656 = vadd.f32 0.0, %v1655
        %1657 = vmatprep.mubr.f32.mxu0 0.0
        %1658 = vmatmul.mubr.f32.gmra.mrb[0].mxu0 %v1508
        %v1659 = vpop.f32.mrb[0].mxu0
        %v1660 = vadd.f32 0.0, %v1659
        %v1661 = vpop.f32.mrb[0].mxu0
        %v1662 = vadd.f32 0.0, %v1661
        %1663 = vmatprep.mubr.f32.mxu0 0.0
        %1664 = vmatmul.mubr.f32.gmra.mrb[0].mxu0 %v1509
        %v1665 = vpop.f32.mrb[0].mxu0
        %v1666 = vadd.f32 0.0, %v1665
        %v1667 = vpop.f32.mrb[0].mxu0
        %v1668 = vadd.f32 0.0, %v1667
        %1669 = vmatprep.mubr.f32.mxu0 0.0
        %1670 = vmatmul.mubr.f32.gmra.mrb[0].mxu0 %v1510
        %v1671 = vpop.f32.mrb[0].mxu0
        %v1672 = vadd.f32 0.0, %v1671
        %v1673 = vpop.f32.mrb[0].mxu0
        %v1674 = vadd.f32 0.0, %v1673
        %1675 = vmatprep.mubr.f32.mxu0 0.0
        %1676 = vmatmul.mubr.f32.gmra.mrb[0].mxu0 %v1511
        %v1677 = vpop.f32.mrb[0].mxu0
        %v1678 = vadd.f32 0.0, %v1677
        %v1679 = vpop.f32.mrb[0].mxu0
        %v1680 = vadd.f32 0.0, %v1679
        %1681 = vmatprep.mubr.f32.mxu0 0.0
        %1682 = vmatmul.mubr.f32.gmra.mrb[0].mxu0 %v1512
        %v1683 = vpop.f32.mrb[0].mxu0
        %v1684 = vadd.f32 0.0, %v1683
        %v1685 = vpop.f32.mrb[0].mxu0
        %v1686 = vadd.f32 0.0, %v1685
        %1687 = vmatprep.mubr.f32.mxu0 0.0
        %1688 = vmatmul.mubr.f32.gmra.mrb[0].mxu0 %v1513
        %v1689 = vpop.f32.mrb[0].mxu0
        %v1690 = vadd.f32 0.0, %v1689
        %v1691 = vpop.f32.mrb[0].mxu0
        %v1692 = vadd.f32 0.0, %v1691
        %1693 = vmatprep.mubr.f32.mxu0 0.0
        %1694 = vmatmul.mubr.f32.gmra.mrb[0].mxu0 %v1514
        %v1695 = vpop.f32.mrb[0].mxu0
        %v1696 = vadd.f32 0.0, %v1695
        %v1697 = vpop.f32.mrb[0].mxu0
        %v1698 = vadd.f32 0.0, %v1697
        %1699 = vmatprep.mubr.f32.mxu0 0.0
        %1700 = vmatmul.mubr.f32.gmra.mrb[0].mxu0 %v1515
        %v1701 = vpop.f32.mrb[0].mxu0
        %v1702 = vadd.f32 0.0, %v1701
        %v1703 = vpop.f32.mrb[0].mxu0
        %v1704 = vadd.f32 0.0, %v1703
        %1705 = vmatprep.mubr.f32.mxu0 0.0
        %1706 = vmatmul.mubr.f32.gmra.mrb[0].mxu0 %v1516
        %v1707 = vpop.f32.mrb[0].mxu0
        %v1708 = vadd.f32 0.0, %v1707
        %v1709 = vpop.f32.mrb[0].mxu0
        %v1710 = vadd.f32 0.0, %v1709
        %1711 = vmatprep.mubr.f32.mxu0 0.0
        %1712 = vmatmul.mubr.f32.gmra.mrb[0].mxu0 %v1517
        %v1713 = vpop.f32.mrb[0].mxu0
        %v1714 = vadd.f32 0.0, %v1713
        %v1715 = vpop.f32.mrb[0].mxu0
        %v1716 = vadd.f32 0.0, %v1715
        %1717 = vmatprep.mubr.f32.mxu0 0.0
        %1718 = vmatmul.mubr.f32.gmra.mrb[0].mxu0 %v1518
        %v1719 = vpop.f32.mrb[0].mxu0
        %v1720 = vadd.f32 0.0, %v1719
        %v1721 = vpop.f32.mrb[0].mxu0
        %v1722 = vadd.f32 0.0, %v1721
        %1723 = vmatprep.mubr.f32.mxu0 0.0
        %1724 = vmatmul.mubr.f32.gmra.mrb[0].mxu0 %v1519
        %v1725 = vpop.f32.mrb[0].mxu0
        %v1726 = vadd.f32 0.0, %v1725
        %v1727 = vpop.f32.mrb[0].mxu0
        %v1728 = vadd.f32 0.0, %v1727
        %1729 = vmatprep.mubr.f32.mxu0 0.0
        %1730 = vmatmul.mubr.f32.gmra.mrb[0].mxu0 %v1520
        %v1731 = vpop.f32.mrb[0].mxu0
        %v1732 = vadd.f32 0.0, %v1731
        %v1733 = vpop.f32.mrb[0].mxu0
        %v1734 = vadd.f32 0.0, %v1733
        %1735 = vmatprep.mubr.f32.mxu0 0.0
        %1736 = vmatmul.mubr.f32.gmra.mrb[0].mxu0 %v1521
        %v1737 = vpop.f32.mrb[0].mxu0
        %v1738 = vadd.f32 0.0, %v1737
        %v1739 = vpop.f32.mrb[0].mxu0
        %v1740 = vadd.f32 0.0, %v1739
        %1741 = vmatprep.mubr.f32.mxu0 0.0
        %1742 = vmatmul.mubr.f32.gmra.mrb[0].mxu0 %v1522
        %v1743 = vpop.f32.mrb[0].mxu0
        %v1744 = vadd.f32 0.0, %v1743
        %v1745 = vpop.f32.mrb[0].mxu0
        %v1746 = vadd.f32 0.0, %v1745
        %1747 = vmatprep.mubr.f32.mxu0 0.0
        %1748 = vmatmul.mubr.f32.gmra.mrb[0].mxu0 %v1523
        %v1749 = vpop.f32.mrb[0].mxu0
        %v1750 = vadd.f32 0.0, %v1749
        %v1751 = vpop.f32.mrb[0].mxu0
        %v1752 = vadd.f32 0.0, %v1751
        %1753 = vmatprep.mubr.f32.mxu0 0.0
        %1754 = vmatmul.mubr.f32.gmra.mrb[0].mxu0 %v1524
        %v1755 = vpop.f32.mrb[0].mxu0
        %v1756 = vadd.f32 0.0, %v1755
        %v1757 = vpop.f32.mrb[0].mxu0
        %v1758 = vadd.f32 0.0, %v1757
        %1759 = vmatprep.mubr.f32.mxu0 0.0
        %1760 = vmatmul.mubr.f32.gmra.mrb[0].mxu0 %v1525
        %v1761 = vpop.f32.mrb[0].mxu0
        %v1762 = vadd.f32 0.0, %v1761
        %v1763 = vpop.f32.mrb[0].mxu0
        %v1764 = vadd.f32 0.0, %v1763
        %1765 = vmatprep.mubr.f32.mxu0 0.0
        %1766 = vmatmul.mubr.f32.gmra.mrb[0].mxu0 %v1526
        %v1767 = vpop.f32.mrb[0].mxu0
        %v1768 = vadd.f32 0.0, %v1767
        %v1769 = vpop.f32.mrb[0].mxu0
        %v1770 = vadd.f32 0.0, %v1769
        %1771 = vmatprep.mubr.f32.mxu0 0.0
        %1772 = vmatmul.mubr.f32.gmra.mrb[0].mxu0 %v1527
        %v1773 = vpop.f32.mrb[0].mxu0
        %v1774 = vadd.f32 0.0, %v1773
        %v1775 = vpop.f32.mrb[0].mxu0
        %v1776 = vadd.f32 0.0, %v1775
        %1777 = vmatprep.mubr.f32.mxu0 0.0
        %1778 = vmatmul.mubr.f32.gmra.mrb[0].mxu0 %v1528
        %v1779 = vpop.f32.mrb[0].mxu0
        %v1780 = vadd.f32 0.0, %v1779
        %v1781 = vpop.f32.mrb[0].mxu0
        %v1782 = vadd.f32 0.0, %v1781
        %1783 = vmatprep.mubr.f32.mxu0 0.0
        %1784 = vmatmul.mubr.f32.gmra.mrb[0].mxu0 %v1529
        %v1785 = vpop.f32.mrb[0].mxu0
        %v1786 = vadd.f32 0.0, %v1785
        %v1787 = vpop.f32.mrb[0].mxu0
        %v1788 = vadd.f32 0.0, %v1787
        %1789 = vmatprep.mubr.f32.mxu0 0.0
        %1790 = vmatmul.mubr.f32.gmra.mrb[0].mxu0 %v1530
        %v1791 = vpop.f32.mrb[0].mxu0
        %v1792 = vadd.f32 0.0, %v1791
        %v1793 = vpop.f32.mrb[0].mxu0
        %v1794 = vadd.f32 0.0, %v1793
        %1795 = vdwg.mxu0
        %v1796 = vadd.f32 %v1531, %v1648
        %v1797 = vadd.f32 %v1532, %v1650
        %v1798 = vadd.f32 %v1533, %v1654
        %v1799 = vadd.f32 %v1534, %v1656
        %v1800 = vadd.f32 %v1535, %v1660
        %v1801 = vadd.f32 %v1536, %v1662
        %v1802 = vadd.f32 %v1537, %v1666
        %v1803 = vadd.f32 %v1538, %v1668
        %v1804 = vadd.f32 %v1539, %v1672
        %v1805 = vadd.f32 %v1540, %v1674
        %v1806 = vadd.f32 %v1541, %v1678
        %v1807 = vadd.f32 %v1542, %v1680
        %v1808 = vadd.f32 %v1543, %v1684
        %v1809 = vadd.f32 %v1544, %v1686
        %v1810 = vadd.f32 %v1545, %v1690
        %v1811 = vadd.f32 %v1546, %v1692
        %v1812 = vadd.f32 %v1547, %v1696
        %v1813 = vadd.f32 %v1548, %v1698
        %v1814 = vadd.f32 %v1549, %v1702
        %v1815 = vadd.f32 %v1550, %v1704
        %v1816 = vadd.f32 %v1551, %v1708
        %v1817 = vadd.f32 %v1552, %v1710
        %v1818 = vadd.f32 %v1553, %v1714
        %v1819 = vadd.f32 %v1554, %v1716
        %v1820 = vadd.f32 %v1555, %v1720
        %v1821 = vadd.f32 %v1556, %v1722
        %v1822 = vadd.f32 %v1557, %v1726
        %v1823 = vadd.f32 %v1558, %v1728
        %v1824 = vadd.f32 %v1559, %v1732
        %v1825 = vadd.f32 %v1560, %v1734
        %v1826 = vadd.f32 %v1561, %v1738
        %v1827 = vadd.f32 %v1562, %v1740
        %v1828 = vadd.f32 %v1563, %v1744
        %v1829 = vadd.f32 %v1564, %v1746
        %v1830 = vadd.f32 %v1565, %v1750
        %v1831 = vadd.f32 %v1566, %v1752
        %v1832 = vadd.f32 %v1567, %v1756
        %v1833 = vadd.f32 %v1568, %v1758
        %v1834 = vadd.f32 %v1569, %v1762
        %v1835 = vadd.f32 %v1570, %v1764
        %v1836 = vadd.f32 %v1571, %v1768
        %v1837 = vadd.f32 %v1572, %v1770
        %v1838 = vadd.f32 %v1573, %v1774
        %v1839 = vadd.f32 %v1574, %v1776
        %v1840 = vadd.f32 %v1575, %v1780
        %v1841 = vadd.f32 %v1576, %v1782
        %v1842 = vadd.f32 %v1577, %v1786
        %v1843 = vadd.f32 %v1578, %v1788
        %v1844 = vadd.f32 %v1579, %v1792
        %v1845 = vadd.f32 %v1580, %v1794
        %1846 = vst [vmem:[%s141] sm:$0xff] %v1796
        %vm1847 = vcmask 588800
        %1848 = vst.msk [vmem:[%s141 + $0x8] sm:$0xff] %vm1847, %v1797
        %1849 = vst [vmem:[%s141 + $0x10] sm:$0xff] %v1798
        %1850 = vst.msk [vmem:[%s141 + $0x18] sm:$0xff] %vm1847, %v1799
        %1851 = vst [vmem:[%s141 + $0x20] sm:$0xff] %v1800
        %1852 = vst.msk [vmem:[%s141 + $0x28] sm:$0xff] %vm1847, %v1801
        %1853 = vst [vmem:[%s141 + $0x30] sm:$0xff] %v1802
        %1854 = vst.msk [vmem:[%s141 + $0x38] sm:$0xff] %vm1847, %v1803
        %1855 = vst [vmem:[%s141 + $0x40] sm:$0xff] %v1804
        %1856 = vst.msk [vmem:[%s141 + $0x48] sm:$0xff] %vm1847, %v1805
        %1857 = vst [vmem:[%s141 + $0x50] sm:$0xff] %v1806
        %1858 = vst.msk [vmem:[%s141 + $0x58] sm:$0xff] %vm1847, %v1807
        %1859 = vst [vmem:[%s141 + $0x60] sm:$0xff] %v1808
        %1860 = vst.msk [vmem:[%s141 + $0x68] sm:$0xff] %vm1847, %v1809
        %1861 = vst [vmem:[%s141 + $0x70] sm:$0xff] %v1810
        %1862 = vst.msk [vmem:[%s141 + $0x78] sm:$0xff] %vm1847, %v1811
        %1863 = vst [vmem:[%s141 + $0x80] sm:$0xff] %v1812
        %1864 = vst.msk [vmem:[%s141 + $0x88] sm:$0xff] %vm1847, %v1813
        %1865 = vst [vmem:[%s141 + $0x90] sm:$0xff] %v1814
        %1866 = vst.msk [vmem:[%s141 + $0x98] sm:$0xff] %vm1847, %v1815
        %1867 = vst [vmem:[%s141 + $0xa0] sm:$0xff] %v1816
        %1868 = vst.msk [vmem:[%s141 + $0xa8] sm:$0xff] %vm1847, %v1817
        %1869 = vst [vmem:[%s141 + $0xb0] sm:$0xff] %v1818
        %1870 = vst.msk [vmem:[%s141 + $0xb8] sm:$0xff] %vm1847, %v1819
        %1871 = vst [vmem:[%s141 + $0xc0] sm:$0xff] %v1820
        %1872 = vst.msk [vmem:[%s141 + $0xc8] sm:$0xff] %vm1847, %v1821
        %1873 = vst [vmem:[%s141 + $0xd0] sm:$0xff] %v1822
        %1874 = vst.msk [vmem:[%s141 + $0xd8] sm:$0xff] %vm1847, %v1823
        %1875 = vst [vmem:[%s141 + $0xe0] sm:$0xff] %v1824
        %1876 = vst.msk [vmem:[%s141 + $0xe8] sm:$0xff] %vm1847, %v1825
        %1877 = vst [vmem:[%s141 + $0xf0] sm:$0xff] %v1826
        %1878 = vst.msk [vmem:[%s141 + $0xf8] sm:$0xff] %vm1847, %v1827
        %1879 = vst [vmem:[%s141 + $0x100] sm:$0xff] %v1828
        %1880 = vst.msk [vmem:[%s141 + $0x108] sm:$0xff] %vm1847, %v1829
        %1881 = vst [vmem:[%s141 + $0x110] sm:$0xff] %v1830
        %1882 = vst.msk [vmem:[%s141 + $0x118] sm:$0xff] %vm1847, %v1831
        %1883 = vst [vmem:[%s141 + $0x120] sm:$0xff] %v1832
        %1884 = vst.msk [vmem:[%s141 + $0x128] sm:$0xff] %vm1847, %v1833
        %1885 = vst [vmem:[%s141 + $0x130] sm:$0xff] %v1834
        %1886 = vst.msk [vmem:[%s141 + $0x138] sm:$0xff] %vm1847, %v1835
        %1887 = vst [vmem:[%s141 + $0x140] sm:$0xff] %v1836
        %1888 = vst.msk [vmem:[%s141 + $0x148] sm:$0xff] %vm1847, %v1837
        %1889 = vst [vmem:[%s141 + $0x150] sm:$0xff] %v1838
        %1890 = vst.msk [vmem:[%s141 + $0x158] sm:$0xff] %vm1847, %v1839
        %1891 = vst [vmem:[%s141 + $0x160] sm:$0xff] %v1840
        %1892 = vst.msk [vmem:[%s141 + $0x168] sm:$0xff] %vm1847, %v1841
        %1893 = vst [vmem:[%s141 + $0x170] sm:$0xff] %v1842
        %1894 = vst.msk [vmem:[%s141 + $0x178] sm:$0xff] %vm1847, %v1843
        %1895 = vst [vmem:[%s141 + $0x180] sm:$0xff] %v1844
        %1896 = vst.msk [vmem:[%s141 + $0x188] sm:$0xff] %vm1847, %v1845
        %s1897 = sand.u32 %s70, 1
        %s1898 = scalar_lea.sflag [#allocation5], %s1897
        %s1899 = sand.u32 %s70, 1
        %s1900 = smul.addr %s1899, 400
        %s1901 = scalar_lea.vmem [#allocation4], %s1900
        // Predicated region
        $region29: #{tpu_custom_call.1} parent=23 // pred_check
          %p1902 = pneg %p80
        $region30: #{tpu_custom_call.1} parent=23 // pred_check_branch
          %1904 = sbr.rel (%p1902) target = $region32
        $region31: #{tpu_custom_call.1} parent=23 // pred_region
          %s1906 = ssub.s32 6400, 6400
          %1907 = vsyncadd %s1898, %s1906
          %s1908 = smul.addr %s26, 50
          %s1909 = smul.addr %s1908, 128
          %s1910 = scalar_lea.hbm %s2, %s1909
          %s1911 = sshll.u32 %s1901, 4
          %s1912 = int_to_ptr.vmem [resolvable:$true] %s1911
          %1917 = dma.vmem_to_hbm [thread:$0]  %s1912, 6400, %s1910, %s1898, 256, 256, 16
        $region32: #{tpu_custom_call.1} parent=23 // pred_fallthru
          _
      $region24: #{tpu_custom_call.1} parent=5 // pred_fallthru
        _
      %p1918 = scmp.le.s32.totalorder 2, %s17
      // Predicated region
      $region33: #{tpu_custom_call.1} parent=5 // pred_check
        %p1919 = pneg %p1918
      $region34: #{tpu_custom_call.1} parent=5 // pred_check_branch
        %1921 = sbr.rel (%p1919) target = $region36
      $region35: #{tpu_custom_call.1} parent=5 // pred_region
        %s1922 = ssub.s32 %s17, 2
        // Predicated region
        $region37: #{tpu_custom_call.1} parent=35 // pred_check
          %p1923 = pneg %p86
        $region38: #{tpu_custom_call.1} parent=35 // pred_check_branch
          %1925 = sbr.rel (%p1923) target = $region40
        $region39: #{tpu_custom_call.1} parent=35 // pred_region
          %s1926 = sand.u32 %s71, 1
          %s1927 = scalar_lea.sflag [#allocation5], %s1926
          %s1928 = sand.u32 %s71, 1
          %s1929 = smul.addr %s1928, 400
          %s1930 = scalar_lea.vmem [#allocation4], %s1929
          %1931 = dma.done %s1927, 6400
        $region40: #{tpu_custom_call.1} parent=35 // pred_fallthru
          _
      $region36: #{tpu_custom_call.1} parent=5 // pred_fallthru
        _
    $region6: #{tpu_custom_call.1} parent=1 // loop_footer
      %s21 = sadd.s32 1, %s17
    $region7: #{tpu_custom_call.1} parent=1 // loop_footer_branch
      %16 = sbr.rel target = $region3
    $region8: #{tpu_custom_call.1} parent=1 // loop_exit
      _
    %1932 = vsyncpa [#allocation5], 1
    %s1933 = scalar_lea.sflag [#allocation5], 1
    %1934 = vsyncpa %s1933, 1

</llo_original>
